<compile_context>
chip_gen: v7x
topology: tpu7x:2x2x1
jax: 0.10.0
libtpu: 0.0.40
codegen_flags: <defaults>
</compile_context>

<pallas_src>
import functools

import jax
import jax.numpy as jnp
from jax.experimental import pallas as pl
from jax.experimental.pallas import tpu as pltpu


# ----------------------------- small helpers -----------------------------

def _round_up(x, m):
    return (x + m - 1) // m * m


def _pad_gates(w, h, hp):
    """Zero-pad each of the 4 PyTorch gate blocks [i,f,g,o] along the last
    axis from width h to width hp (gate k ends up at [..., k*hp:(k+1)*hp])."""
    if hp == h:
        return w
    pad = [(0, 0)] * (w.ndim - 1) + [(0, hp - h)]
    return jnp.concatenate(
        [jnp.pad(w[..., k * h:(k + 1) * h], pad) for k in range(4)], axis=-1)


# ------------------- kernel 1: hoisted input projection -------------------

def _proj_kernel(x_ref, w_ref, b_ref, o_ref):
    # (tm, Din) @ (Din, 4Hp) + (1, 4Hp) -> (tm, 4Hp), f32 accumulation on MXU.
    o_ref[...] = (jnp.dot(x_ref[...], w_ref[...],
                          preferred_element_type=jnp.float32)
                  + b_ref[...])


def input_projection_pallas(x2d, w_ih_p, b_p, compute_dtype=jnp.bfloat16):
    """gates_x = x2d @ w_ih_p + b_p for the whole sequence at once.

    x2d:    (M, Din) f32, M = S * Bp
    w_ih_p: (Din, 4Hp) f32 (cast to compute_dtype here)
    b_p:    (1, 4Hp) f32
    returns (M, 4Hp) f32
    """
    m, din = x2d.shape
    n = w_ih_p.shape[1]

    tm = min(128, _round_up(m, 16))      # bf16-friendly row tile
    mp = _round_up(m, tm)
    x_pad = jnp.pad(x2d, ((0, mp - m), (0, 0)))

    grid_spec = pltpu.PrefetchScalarGridSpec(
        num_scalar_prefetch=0,
        grid=(mp // tm,),
        in_specs=[
            pl.BlockSpec((tm, din), lambda i: (i, 0)),    # row tile of x
            pl.BlockSpec((din, n), lambda i: (0, 0)),     # whole W_ih
            pl.BlockSpec((1, n), lambda i: (0, 0)),       # bias
        ],
        out_specs=pl.BlockSpec((tm, n), lambda i: (i, 0)),
    )
    out = pl.pallas_call(
        _proj_kernel,
        out_shape=jax.ShapeDtypeStruct((mp, n), jnp.float32),
        grid_spec=grid_spec,
        compiler_params=pltpu.CompilerParams(
            dimension_semantics=("parallel",)),
    )(x_pad.astype(compute_dtype), w_ih_p.astype(compute_dtype), b_p)
    return out[:m]


# ------------------- kernel 2: chunked LSTM recurrence -------------------

def _lstm_rnn_kernel(gx_ref, w_hh_ref, out_ref, h_out_ref, c_out_ref,
                     h_scr, c_scr, *, seq_len, chunk):
    """One grid step = `chunk` LSTM timesteps. h/c carried in the fori_loop
    carry (vregs) and flushed to VMEM scratch once per chunk."""
    ci = pl.program_id(0)
    hp = h_scr.shape[-1]

    @pl.when(ci == 0)
    def _init():
        h_scr[...] = jnp.zeros_like(h_scr)
        c_scr[...] = jnp.zeros_like(c_scr)

    w_hh = w_hh_ref[...]                      # (Hp, 4Hp), compute dtype (bf16)

    def step(i, carry):
        h, c = carry                          # (Bp, Hp) f32
        gates = (jnp.dot(h.astype(w_hh.dtype), w_hh,
                         preferred_element_type=jnp.float32)
                 + gx_ref[i])                 # (Bp, 4Hp) f32

        # Lane-aligned gate slices (Hp is a multiple of 128).
        i_g = jax.nn.sigmoid(gates[:, 0 * hp:1 * hp])
        f_g = jax.nn.sigmoid(gates[:, 1 * hp:2 * hp])
        g_g = jnp.tanh(gates[:, 2 * hp:3 * hp])
        o_g = jax.nn.sigmoid(gates[:, 3 * hp:4 * hp])

        c_new = f_g * c + i_g * g_g
        h_new = o_g * jnp.tanh(c_new)

        if seq_len % chunk != 0:
            # Padded tail timesteps must not advance the state.
            valid = (ci * chunk + i) < seq_len
            h_new = jnp.where(valid, h_new, h)
            c_new = jnp.where(valid, c_new, c)

        out_ref[i] = h_new                    # lane-dense (Bp, Hp) store
        return h_new, c_new

    h, c = jax.lax.fori_loop(0, chunk, step,
                             (h_scr[...], c_scr[...]), unroll=True)
    h_scr[...] = h
    c_scr[...] = c

    @pl.when(ci == pl.num_programs(0) - 1)
    def _final():
        h_out_ref[...] = h
        c_out_ref[...] = c


def lstm_layer_pallas(x, w_ih, w_hh, b, *, chunk=4,
                      compute_dtype=jnp.bfloat16):
    """Run one LSTM layer over the whole sequence.

    x:    (S, B, Din) f32
    w_ih: (Din, 4H)   f32
    w_hh: (H, 4H)     f32
    b:    (1, 4H)     f32   (= b_ih + b_hh)
    returns (outputs (S,B,H), h_final (B,H), c_final (B,H))
    """
    s, bsz, din = x.shape
    h = w_hh.shape[0]

    hp = _round_up(h, 128)       # lane-dense hidden
    bp = _round_up(bsz, 8)       # full sublanes
    sp = _round_up(s, chunk)
    nchunks = sp // chunk

    # Zero-padded weights: padded hidden entries provably stay 0 through the
    # recurrence (zero weights + zero bias -> g=0, c stays 0, h stays 0).
    w_ih_p = _pad_gates(w_ih, h, hp)                                 # (Din,4Hp)
    w_hh_p = _pad_gates(jnp.pad(w_hh, ((0, hp - h), (0, 0))), h, hp)  # (Hp,4Hp)
    b_p = _pad_gates(b, h, hp)                                       # (1, 4Hp)

    # --- hoisted, sequence-wide input projection ---
    x_p = jnp.pad(x, ((0, 0), (0, bp - bsz), (0, 0)))                # (S,Bp,Din)
    gx = input_projection_pallas(x_p.reshape(s * bp, din), w_ih_p, b_p,
                                 compute_dtype)                      # (S*Bp,4Hp)
    gx = gx.reshape(s, bp, 4 * hp)
    gx = jnp.pad(gx, ((0, sp - s), (0, 0), (0, 0)))                  # (Sp,Bp,4Hp)

    # --- sequential recurrence over time chunks ---
    out_shapes = (
        jax.ShapeDtypeStruct((sp, bp, hp), jnp.float32),
        jax.ShapeDtypeStruct((bp, hp), jnp.float32),
        jax.ShapeDtypeStruct((bp, hp), jnp.float32),
    )
    grid_spec = pltpu.PrefetchScalarGridSpec(
        num_scalar_prefetch=0,
        grid=(nchunks,),
        in_specs=[
            pl.BlockSpec((chunk, bp, 4 * hp), lambda ci: (ci, 0, 0)),  # gates_x
            pl.BlockSpec((hp, 4 * hp), lambda ci: (0, 0)),             # W_hh
        ],
        out_specs=[
            pl.BlockSpec((chunk, bp, hp), lambda ci: (ci, 0, 0)),      # outputs
            pl.BlockSpec((bp, hp), lambda ci: (0, 0)),                 # final h
            pl.BlockSpec((bp, hp), lambda ci: (0, 0)),                 # final c
        ],
        scratch_shapes=[
            pltpu.VMEM((bp, hp), jnp.float32),   # h carry across chunks
            pltpu.VMEM((bp, hp), jnp.float32),   # c carry across chunks
        ],
    )
    kernel = functools.partial(_lstm_rnn_kernel, seq_len=s, chunk=chunk)
    outputs, h_fin, c_fin = pl.pallas_call(
        kernel,
        out_shape=out_shapes,
        grid_spec=grid_spec,
        compiler_params=pltpu.CompilerParams(
            dimension_semantics=("arbitrary",)),   # sequential recurrence
    )(gx, w_hh_p.astype(compute_dtype))

    return outputs[:s, :bsz, :h], h_fin[:bsz, :h], c_fin[:bsz, :h]


# ----------------------------- Encoder forward -----------------------------

def encoder_forward(x_ids, embedding_table, layer_params,
                    compute_dtype=jnp.bfloat16):
    """x_ids: (S, B) int32 -> (hidden, cell), each (num_layers, B, H)."""
    # Embedding lookup (plain-JAX glue).
    emb = jnp.take(embedding_table, x_ids, axis=0)          # (S, B, E)
    # TODO(synk): nn.Dropout / LSTM inter-layer dropout are identity at
    # inference (eval mode); training-mode dropout masks are not implemented.
    layer_in = emb
    hs, cs = [], []
    for (w_ih, w_hh, b) in layer_params:
        outputs, h, c = lstm_layer_pallas(layer_in, w_ih, w_hh, b,
                                          compute_dtype=compute_dtype)
        hs.append(h)
        cs.append(c)
        layer_in = outputs
    hidden = jnp.stack(hs, axis=0)   # (num_layers, B, H)
    cell = jnp.stack(cs, axis=0)     # (num_layers, B, H)
    return hidden, cell


# ----------------------------- pure-JAX reference -----------------------------

def _lstm_layer_ref(x, w_ih, w_hh, b, compute_dtype=jnp.bfloat16):
    hsz = w_hh.shape[0]
    s, bsz, din = x.shape
    gx = jnp.dot(x.reshape(s * bsz, din).astype(compute_dtype),
                 w_ih.astype(compute_dtype),
                 preferred_element_type=jnp.float32).reshape(s, bsz, 4 * hsz)
    gx = gx + b
    w_hh_c = w_hh.astype(compute_dtype)

    def step(carry, gx_t):
        h, c = carry
        gates = jnp.dot(h.astype(compute_dtype), w_hh_c,
                        preferred_element_type=jnp.float32) + gx_t
        i = jax.nn.sigmoid(gates[:, :hsz])
        f = jax.nn.sigmoid(gates[:, hsz:2 * hsz])
        g = jnp.tanh(gates[:, 2 * hsz:3 * hsz])
        o = jax.nn.sigmoid(gates[:, 3 * hsz:])
        c = f * c + i * g
        h = o * jnp.tanh(c)
        return (h, c), h

    init = (jnp.zeros((bsz, hsz), jnp.float32),
            jnp.zeros((bsz, hsz), jnp.float32))
    (h, c), outs = jax.lax.scan(step, init, gx)
    return outs, h, c


def encoder_forward_ref(x_ids, embedding_table, layer_params,
                        compute_dtype=jnp.bfloat16):
    layer_in = jnp.take(embedding_table, x_ids, axis=0)
    hs, cs = [], []
    for (w_ih, w_hh, b) in layer_params:
        outputs, h, c = _lstm_layer_ref(layer_in, w_ih, w_hh, b, compute_dtype)
        hs.append(h)
        cs.append(c)
        layer_in = outputs
    return jnp.stack(hs, 0), jnp.stack(cs, 0)


# ----------------------------- main -----------------------------

if __name__ == "__main__":
    # Small shapes consistent with Encoder(input_size, embedding_size,
    # hidden_size, num_layers, p).
    input_size = 16       # vocab size
    embedding_size = 32
    hidden_size = 32
    num_layers = 2
    seq_len, batch = 10, 2    # seq_len not a multiple of the time chunk -> exercises masking

    key = jax.random.PRNGKey(0)
    k_emb, k_x, *k_w = jax.random.split(key, 2 + 4 * num_layers)

    # nn.Embedding default init: N(0, 1)
    embedding_table = jax.random.normal(
        k_emb, (input_size, embedding_size), jnp.float32)

    # nn.LSTM default init: U(-1/sqrt(H), 1/sqrt(H)) for all weights/biases.
    bound = 1.0 / float(hidden_size) ** 0.5
    layer_params = []
    for layer in range(num_layers):
        din = embedding_size if layer == 0 else hidden_size
        kw_ih, kw_hh, kb_ih, kb_hh = k_w[4 * layer: 4 * layer + 4]
        w_ih = jax.random.uniform(kw_ih, (din, 4 * hidden_size),
                                  jnp.float32, -bound, bound)
        w_hh = jax.random.uniform(kw_hh, (hidden_size, 4 * hidden_size),
                                  jnp.float32, -bound, bound)
        b_ih = jax.random.uniform(kb_ih, (4 * hidden_size,),
                                  jnp.float32, -bound, bound)
        b_hh = jax.random.uniform(kb_hh, (4 * hidden_size,),
                                  jnp.float32, -bound, bound)
        b = (b_ih + b_hh).reshape(1, 4 * hidden_size)
        layer_params.append((w_ih, w_hh, b))

    # Token ids, seq-first like PyTorch's default (batch_first=False) LSTM.
    x_ids = jax.random.randint(k_x, (seq_len, batch), 0, input_size, jnp.int32)

    hidden, cell = jax.jit(encoder_forward)(x_ids, embedding_table,
                                            layer_params)
    jax.block_until_ready((hidden, cell))

    # Cross-check against a pure-JAX reference using the same mixed precision.
    hidden_ref, cell_ref = encoder_forward_ref(x_ids, embedding_table,
                                               layer_params)
    assert hidden.shape == (num_layers, batch, hidden_size)
    assert cell.shape == (num_layers, batch, hidden_size)
    assert jnp.allclose(hidden, hidden_ref, atol=1e-2, rtol=1e-2), (
        float(jnp.max(jnp.abs(hidden - hidden_ref))))
    assert jnp.allclose(cell, cell_ref, atol=1e-2, rtol=1e-2), (
        float(jnp.max(jnp.abs(cell - cell_ref))))

    print("KERNEL_OK")
</pallas_src>

<mosaic_0001>
module attributes {stable_mosaic.version = 11 : i64} {
  func.func @_proj_kernel(%arg0: i32, %arg1: memref<80x32xbf16, #tpu.memory_space<vmem>>, %arg2: memref<32x512xbf16, #tpu.memory_space<vmem>>, %arg3: memref<1x512xf32, #tpu.memory_space<vmem>>, %arg4: memref<80x512xf32, #tpu.memory_space<vmem>>) attributes {dimension_semantics = [#tpu.dimension_semantics<parallel>], iteration_bounds = array<i64: 1>, scalar_prefetch = 0 : i64, scratch_operands = 0 : i64, tpu.core_type = #tpu.core_type<tc>, window_params = [{transform_indices = @transform_0, window_bounds = array<i64: 80, 32>}, {pipeline_mode = #tpu.pipeline_mode<synchronous>, transform_indices = @transform_1, window_bounds = array<i64: 32, 512>}, {pipeline_mode = #tpu.pipeline_mode<synchronous>, transform_indices = @transform_2, window_bounds = array<i64: 1, 512>}, {transform_indices = @transform_3, window_bounds = array<i64: 80, 512>}]} {
    %c0 = arith.constant 0 : index
    %c0_0 = arith.constant 0 : index
    %0 = vector.load %arg1[%c0, %c0_0] : memref<80x32xbf16, #tpu.memory_space<vmem>>, vector<80x32xbf16>
    %c0_1 = arith.constant 0 : index
    %c0_2 = arith.constant 0 : index
    %1 = vector.load %arg2[%c0_1, %c0_2] : memref<32x512xbf16, #tpu.memory_space<vmem>>, vector<32x512xbf16>
    %cst = arith.constant dense<0.000000e+00> : vector<80x512xf32>
    %2 = tpu.matmul %0, %1, %cst {dimension_numbers = #tpu.dot_dimension_numbers<[1], [0], [0], [1], [0, 0, 1, 1], [], []>} : vector<80x32xbf16>, vector<32x512xbf16>, vector<80x512xf32> -> vector<80x512xf32>
    %c0_3 = arith.constant 0 : index
    %c0_4 = arith.constant 0 : index
    %3 = vector.load %arg3[%c0_3, %c0_4] : memref<1x512xf32, #tpu.memory_space<vmem>>, vector<1x512xf32>
    %4 = vector.broadcast %3 : vector<1x512xf32> to vector<80x512xf32>
    %5 = arith.addf %2, %4 : vector<80x512xf32>
    %c0_5 = arith.constant 0 : index
    %c0_6 = arith.constant 0 : index
    %6 = vector.load %arg4[%c0_5, %c0_6] : memref<80x512xf32, #tpu.memory_space<vmem>>, vector<80x512xf32>
    tpu.vector_store %arg4[%c0_5, %c0_6], %5 {strides = array<i32>} : memref<80x512xf32, #tpu.memory_space<vmem>>, vector<80x512xf32>,
    return
  }
  func.func @transform_0(%arg0: i32) -> (i32, i32) {
    %c0_i32 = arith.constant 0 : i32
    %c0_i32_0 = arith.constant 0 : i32
    return %arg0, %c0_i32 : i32, i32
  }
  func.func @transform_1(%arg0: i32) -> (i32, i32) {
    %c0_i32 = arith.constant 0 : i32
    %c0_i32_0 = arith.constant 0 : i32
    %c0_i32_1 = arith.constant 0 : i32
    return %c0_i32, %c0_i32_0 : i32, i32
  }
  func.func @transform_2(%arg0: i32) -> (i32, i32) {
    %c0_i32 = arith.constant 0 : i32
    %c0_i32_0 = arith.constant 0 : i32
    %c0_i32_1 = arith.constant 0 : i32
    return %c0_i32, %c0_i32_0 : i32, i32
  }
  func.func @transform_3(%arg0: i32) -> (i32, i32) {
    %c0_i32 = arith.constant 0 : i32
    %c0_i32_0 = arith.constant 0 : i32
    return %arg0, %c0_i32 : i32, i32
  }
}

module attributes {stable_mosaic.version = 11 : i64} {
  func.func @_lstm_rnn_kernel(%arg0: i32, %arg1: memref<4x8x512xf32, #tpu.memory_space<vmem>>, %arg2: memref<128x512xbf16, #tpu.memory_space<vmem>>, %arg3: memref<4x8x128xf32, #tpu.memory_space<vmem>>, %arg4: memref<8x128xf32, #tpu.memory_space<vmem>>, %arg5: memref<8x128xf32, #tpu.memory_space<vmem>>, %arg6: memref<8x128xf32, #tpu.memory_space<vmem>>, %arg7: memref<8x128xf32, #tpu.memory_space<vmem>>) attributes {dimension_semantics = [#tpu.dimension_semantics<arbitrary>], iteration_bounds = array<i64: 3>, scalar_prefetch = 0 : i64, scratch_operands = 2 : i64, tpu.core_type = #tpu.core_type<tc>, window_params = [{transform_indices = @transform_0, window_bounds = array<i64: 4, 8, 512>}, {pipeline_mode = #tpu.pipeline_mode<synchronous>, transform_indices = @transform_1, window_bounds = array<i64: 128, 512>}, {transform_indices = @transform_2, window_bounds = array<i64: 4, 8, 128>}, {pipeline_mode = #tpu.pipeline_mode<synchronous>, transform_indices = @transform_3, window_bounds = array<i64: 8, 128>}, {pipeline_mode = #tpu.pipeline_mode<synchronous>, transform_indices = @transform_4, window_bounds = array<i64: 8, 128>}]} {
    %c0_i32 = arith.constant 0 : i32
    %0 = arith.cmpi eq, %arg0, %c0_i32 : i32
    %1 = arith.extui %0 : i1 to i32
    %c0_i32_0 = arith.constant 0 : i32
    %2 = arith.cmpi ne, %1, %c0_i32_0 : i32
    scf.if %2 {
      %cst_51 = arith.constant 0.000000e+00 : f32
      %171 = vector.broadcast %cst_51 : f32 to vector<8x128xf32>
      %c0_52 = arith.constant 0 : index
      %c0_53 = arith.constant 0 : index
      %172 = vector.load %arg6[%c0_52, %c0_53] : memref<8x128xf32, #tpu.memory_space<vmem>>, vector<8x128xf32>
      tpu.vector_store %arg6[%c0_52, %c0_53], %171 {strides = array<i32>} : memref<8x128xf32, #tpu.memory_space<vmem>>, vector<8x128xf32>,
      %cst_54 = arith.constant 0.000000e+00 : f32
      %173 = vector.broadcast %cst_54 : f32 to vector<8x128xf32>
      %c0_55 = arith.constant 0 : index
      %c0_56 = arith.constant 0 : index
      %174 = vector.load %arg7[%c0_55, %c0_56] : memref<8x128xf32, #tpu.memory_space<vmem>>, vector<8x128xf32>
      tpu.vector_store %arg7[%c0_55, %c0_56], %173 {strides = array<i32>} : memref<8x128xf32, #tpu.memory_space<vmem>>, vector<8x128xf32>,
    } else {
    }
    %c0 = arith.constant 0 : index
    %c0_1 = arith.constant 0 : index
    %3 = vector.load %arg2[%c0, %c0_1] : memref<128x512xbf16, #tpu.memory_space<vmem>>, vector<128x512xbf16>
    %c0_2 = arith.constant 0 : index
    %c0_3 = arith.constant 0 : index
    %4 = vector.load %arg6[%c0_2, %c0_3] : memref<8x128xf32, #tpu.memory_space<vmem>>, vector<8x128xf32>
    %c0_4 = arith.constant 0 : index
    %c0_5 = arith.constant 0 : index
    %5 = vector.load %arg7[%c0_4, %c0_5] : memref<8x128xf32, #tpu.memory_space<vmem>>, vector<8x128xf32>
    %c0_i32_6 = arith.constant 0 : i32
    %6 = arith.truncf %4 : vector<8x128xf32> to vector<8x128xbf16>
    %cst = arith.constant dense<0.000000e+00> : vector<8x512xf32>
    %7 = tpu.matmul %6, %3, %cst {dimension_numbers = #tpu.dot_dimension_numbers<[1], [0], [0], [1], [0, 0, 1, 1], [], []>} : vector<8x128xbf16>, vector<128x512xbf16>, vector<8x512xf32> -> vector<8x512xf32>
    %8 = arith.index_cast %c0_i32_6 : i32 to index
    %c0_7 = arith.constant 0 : index
    %c0_8 = arith.constant 0 : index
    %9 = vector.load %arg1[%8, %c0_7, %c0_8] : memref<4x8x512xf32, #tpu.memory_space<vmem>>, vector<1x8x512xf32>
    %10 = vector.shape_cast %9 : vector<1x8x512xf32> to vector<8x512xf32>
    %11 = arith.addf %7, %10 : vector<8x512xf32>
    %12 = vector.extract_strided_slice %11 {offsets = [0, 0], sizes = [8, 128], strides = [1, 1]} : vector<8x512xf32> to vector<8x128xf32>
    %13 = arith.negf %12 : vector<8x128xf32>
    %14 = math.exp %13 : vector<8x128xf32>
    %cst_9 = arith.constant 1.000000e+00 : f32
    %15 = vector.broadcast %cst_9 : f32 to vector<8x128xf32>
    %16 = arith.addf %15, %14 : vector<8x128xf32>
    %17 = arith.divf %15, %16 : vector<8x128xf32>
    %18 = vector.extract_strided_slice %11 {offsets = [0, 128], sizes = [8, 128], strides = [1, 1]} : vector<8x512xf32> to vector<8x128xf32>
    %19 = arith.negf %18 : vector<8x128xf32>
    %20 = math.exp %19 : vector<8x128xf32>
    %cst_10 = arith.constant 1.000000e+00 : f32
    %21 = vector.broadcast %cst_10 : f32 to vector<8x128xf32>
    %22 = arith.addf %21, %20 : vector<8x128xf32>
    %23 = arith.divf %21, %22 : vector<8x128xf32>
    %24 = vector.extract_strided_slice %11 {offsets = [0, 256], sizes = [8, 128], strides = [1, 1]} : vector<8x512xf32> to vector<8x128xf32>
    %25 = math.tanh %24 : vector<8x128xf32>
    %26 = vector.extract_strided_slice %11 {offsets = [0, 384], sizes = [8, 128], strides = [1, 1]} : vector<8x512xf32> to vector<8x128xf32>
    %27 = arith.negf %26 : vector<8x128xf32>
    %28 = math.exp %27 : vector<8x128xf32>
    %cst_11 = arith.constant 1.000000e+00 : f32
    %29 = vector.broadcast %cst_11 : f32 to vector<8x128xf32>
    %30 = arith.addf %29, %28 : vector<8x128xf32>
    %31 = arith.divf %29, %30 : vector<8x128xf32>
    %32 = arith.mulf %23, %5 : vector<8x128xf32>
    %33 = arith.mulf %17, %25 : vector<8x128xf32>
    %34 = arith.addf %32, %33 : vector<8x128xf32>
    %35 = math.tanh %34 : vector<8x128xf32>
    %36 = arith.mulf %31, %35 : vector<8x128xf32>
    %c4_i32 = arith.constant 4 : i32
    %37 = arith.muli %arg0, %c4_i32 : i32
    %38 = arith.addi %37, %c0_i32_6 : i32
    %c10_i32 = arith.constant 10 : i32
    %39 = arith.cmpi slt, %38, %c10_i32 : i32
    %40 = arith.select %39, %36, %4 : vector<8x128xf32>
    %41 = arith.select %39, %34, %5 : vector<8x128xf32>
    %42 = arith.index_cast %c0_i32_6 : i32 to index
    %c0_12 = arith.constant 0 : index
    %c0_13 = arith.constant 0 : index
    %43 = vector.load %arg3[%42, %c0_12, %c0_13] : memref<4x8x128xf32, #tpu.memory_space<vmem>>, vector<1x8x128xf32>
    %44 = vector.shape_cast %43 : vector<1x8x128xf32> to vector<8x128xf32>
    %45 = vector.shape_cast %40 : vector<8x128xf32> to vector<1x8x128xf32>
    tpu.vector_store %arg3[%42, %c0_12, %c0_13], %45 {strides = array<i32>} : memref<4x8x128xf32, #tpu.memory_space<vmem>>, vector<1x8x128xf32>,
    %c1_i32 = arith.constant 1 : i32
    %46 = arith.truncf %40 : vector<8x128xf32> to vector<8x128xbf16>
    %cst_14 = arith.constant dense<0.000000e+00> : vector<8x512xf32>
    %47 = tpu.matmul %46, %3, %cst_14 {dimension_numbers = #tpu.dot_dimension_numbers<[1], [0], [0], [1], [0, 0, 1, 1], [], []>} : vector<8x128xbf16>, vector<128x512xbf16>, vector<8x512xf32> -> vector<8x512xf32>
    %48 = arith.index_cast %c1_i32 : i32 to index
    %c0_15 = arith.constant 0 : index
    %c0_16 = arith.constant 0 : index
    %49 = vector.load %arg1[%48, %c0_15, %c0_16] : memref<4x8x512xf32, #tpu.memory_space<vmem>>, vector<1x8x512xf32>
    %50 = vector.shape_cast %49 : vector<1x8x512xf32> to vector<8x512xf32>
    %51 = arith.addf %47, %50 : vector<8x512xf32>
    %52 = vector.extract_strided_slice %51 {offsets = [0, 0], sizes = [8, 128], strides = [1, 1]} : vector<8x512xf32> to vector<8x128xf32>
    %53 = arith.negf %52 : vector<8x128xf32>
    %54 = math.exp %53 : vector<8x128xf32>
    %cst_17 = arith.constant 1.000000e+00 : f32
    %55 = vector.broadcast %cst_17 : f32 to vector<8x128xf32>
    %56 = arith.addf %55, %54 : vector<8x128xf32>
    %57 = arith.divf %55, %56 : vector<8x128xf32>
    %58 = vector.extract_strided_slice %51 {offsets = [0, 128], sizes = [8, 128], strides = [1, 1]} : vector<8x512xf32> to vector<8x128xf32>
    %59 = arith.negf %58 : vector<8x128xf32>
    %60 = math.exp %59 : vector<8x128xf32>
    %cst_18 = arith.constant 1.000000e+00 : f32
    %61 = vector.broadcast %cst_18 : f32 to vector<8x128xf32>
    %62 = arith.addf %61, %60 : vector<8x128xf32>
    %63 = arith.divf %61, %62 : vector<8x128xf32>
    %64 = vector.extract_strided_slice %51 {offsets = [0, 256], sizes = [8, 128], strides = [1, 1]} : vector<8x512xf32> to vector<8x128xf32>
    %65 = math.tanh %64 : vector<8x128xf32>
    %66 = vector.extract_strided_slice %51 {offsets = [0, 384], sizes = [8, 128], strides = [1, 1]} : vector<8x512xf32> to vector<8x128xf32>
    %67 = arith.negf %66 : vector<8x128xf32>
    %68 = math.exp %67 : vector<8x128xf32>
    %cst_19 = arith.constant 1.000000e+00 : f32
    %69 = vector.broadcast %cst_19 : f32 to vector<8x128xf32>
    %70 = arith.addf %69, %68 : vector<8x128xf32>
    %71 = arith.divf %69, %70 : vector<8x128xf32>
    %72 = arith.mulf %63, %41 : vector<8x128xf32>
    %73 = arith.mulf %57, %65 : vector<8x128xf32>
    %74 = arith.addf %72, %73 : vector<8x128xf32>
    %75 = math.tanh %74 : vector<8x128xf32>
    %76 = arith.mulf %71, %75 : vector<8x128xf32>
    %c4_i32_20 = arith.constant 4 : i32
    %77 = arith.muli %arg0, %c4_i32_20 : i32
    %78 = arith.addi %77, %c1_i32 : i32
    %c10_i32_21 = arith.constant 10 : i32
    %79 = arith.cmpi slt, %78, %c10_i32_21 : i32
    %80 = arith.select %79, %76, %40 : vector<8x128xf32>
    %81 = arith.select %79, %74, %41 : vector<8x128xf32>
    %82 = arith.index_cast %c1_i32 : i32 to index
    %c0_22 = arith.constant 0 : index
    %c0_23 = arith.constant 0 : index
    %83 = vector.load %arg3[%82, %c0_22, %c0_23] : memref<4x8x128xf32, #tpu.memory_space<vmem>>, vector<1x8x128xf32>
    %84 = vector.shape_cast %83 : vector<1x8x128xf32> to vector<8x128xf32>
    %85 = vector.shape_cast %80 : vector<8x128xf32> to vector<1x8x128xf32>
    tpu.vector_store %arg3[%82, %c0_22, %c0_23], %85 {strides = array<i32>} : memref<4x8x128xf32, #tpu.memory_space<vmem>>, vector<1x8x128xf32>,
    %c2_i32 = arith.constant 2 : i32
    %86 = arith.truncf %80 : vector<8x128xf32> to vector<8x128xbf16>
    %cst_24 = arith.constant dense<0.000000e+00> : vector<8x512xf32>
    %87 = tpu.matmul %86, %3, %cst_24 {dimension_numbers = #tpu.dot_dimension_numbers<[1], [0], [0], [1], [0, 0, 1, 1], [], []>} : vector<8x128xbf16>, vector<128x512xbf16>, vector<8x512xf32> -> vector<8x512xf32>
    %88 = arith.index_cast %c2_i32 : i32 to index
    %c0_25 = arith.constant 0 : index
    %c0_26 = arith.constant 0 : index
    %89 = vector.load %arg1[%88, %c0_25, %c0_26] : memref<4x8x512xf32, #tpu.memory_space<vmem>>, vector<1x8x512xf32>
    %90 = vector.shape_cast %89 : vector<1x8x512xf32> to vector<8x512xf32>
    %91 = arith.addf %87, %90 : vector<8x512xf32>
    %92 = vector.extract_strided_slice %91 {offsets = [0, 0], sizes = [8, 128], strides = [1, 1]} : vector<8x512xf32> to vector<8x128xf32>
    %93 = arith.negf %92 : vector<8x128xf32>
    %94 = math.exp %93 : vector<8x128xf32>
    %cst_27 = arith.constant 1.000000e+00 : f32
    %95 = vector.broadcast %cst_27 : f32 to vector<8x128xf32>
    %96 = arith.addf %95, %94 : vector<8x128xf32>
    %97 = arith.divf %95, %96 : vector<8x128xf32>
    %98 = vector.extract_strided_slice %91 {offsets = [0, 128], sizes = [8, 128], strides = [1, 1]} : vector<8x512xf32> to vector<8x128xf32>
    %99 = arith.negf %98 : vector<8x128xf32>
    %100 = math.exp %99 : vector<8x128xf32>
    %cst_28 = arith.constant 1.000000e+00 : f32
    %101 = vector.broadcast %cst_28 : f32 to vector<8x128xf32>
    %102 = arith.addf %101, %100 : vector<8x128xf32>
    %103 = arith.divf %101, %102 : vector<8x128xf32>
    %104 = vector.extract_strided_slice %91 {offsets = [0, 256], sizes = [8, 128], strides = [1, 1]} : vector<8x512xf32> to vector<8x128xf32>
    %105 = math.tanh %104 : vector<8x128xf32>
    %106 = vector.extract_strided_slice %91 {offsets = [0, 384], sizes = [8, 128], strides = [1, 1]} : vector<8x512xf32> to vector<8x128xf32>
    %107 = arith.negf %106 : vector<8x128xf32>
    %108 = math.exp %107 : vector<8x128xf32>
    %cst_29 = arith.constant 1.000000e+00 : f32
    %109 = vector.broadcast %cst_29 : f32 to vector<8x128xf32>
    %110 = arith.addf %109, %108 : vector<8x128xf32>
    %111 = arith.divf %109, %110 : vector<8x128xf32>
    %112 = arith.mulf %103, %81 : vector<8x128xf32>
    %113 = arith.mulf %97, %105 : vector<8x128xf32>
    %114 = arith.addf %112, %113 : vector<8x128xf32>
    %115 = math.tanh %114 : vector<8x128xf32>
    %116 = arith.mulf %111, %115 : vector<8x128xf32>
    %c4_i32_30 = arith.constant 4 : i32
    %117 = arith.muli %arg0, %c4_i32_30 : i32
    %118 = arith.addi %117, %c2_i32 : i32
    %c10_i32_31 = arith.constant 10 : i32
    %119 = arith.cmpi slt, %118, %c10_i32_31 : i32
    %120 = arith.select %119, %116, %80 : vector<8x128xf32>
    %121 = arith.select %119, %114, %81 : vector<8x128xf32>
    %122 = arith.index_cast %c2_i32 : i32 to index
    %c0_32 = arith.constant 0 : index
    %c0_33 = arith.constant 0 : index
    %123 = vector.load %arg3[%122, %c0_32, %c0_33] : memref<4x8x128xf32, #tpu.memory_space<vmem>>, vector<1x8x128xf32>
    %124 = vector.shape_cast %123 : vector<1x8x128xf32> to vector<8x128xf32>
    %125 = vector.shape_cast %120 : vector<8x128xf32> to vector<1x8x128xf32>
    tpu.vector_store %arg3[%122, %c0_32, %c0_33], %125 {strides = array<i32>} : memref<4x8x128xf32, #tpu.memory_space<vmem>>, vector<1x8x128xf32>,
    %c3_i32 = arith.constant 3 : i32
    %126 = arith.truncf %120 : vector<8x128xf32> to vector<8x128xbf16>
    %cst_34 = arith.constant dense<0.000000e+00> : vector<8x512xf32>
    %127 = tpu.matmul %126, %3, %cst_34 {dimension_numbers = #tpu.dot_dimension_numbers<[1], [0], [0], [1], [0, 0, 1, 1], [], []>} : vector<8x128xbf16>, vector<128x512xbf16>, vector<8x512xf32> -> vector<8x512xf32>
    %128 = arith.index_cast %c3_i32 : i32 to index
    %c0_35 = arith.constant 0 : index
    %c0_36 = arith.constant 0 : index
    %129 = vector.load %arg1[%128, %c0_35, %c0_36] : memref<4x8x512xf32, #tpu.memory_space<vmem>>, vector<1x8x512xf32>
    %130 = vector.shape_cast %129 : vector<1x8x512xf32> to vector<8x512xf32>
    %131 = arith.addf %127, %130 : vector<8x512xf32>
    %132 = vector.extract_strided_slice %131 {offsets = [0, 0], sizes = [8, 128], strides = [1, 1]} : vector<8x512xf32> to vector<8x128xf32>
    %133 = arith.negf %132 : vector<8x128xf32>
    %134 = math.exp %133 : vector<8x128xf32>
    %cst_37 = arith.constant 1.000000e+00 : f32
    %135 = vector.broadcast %cst_37 : f32 to vector<8x128xf32>
    %136 = arith.addf %135, %134 : vector<8x128xf32>
    %137 = arith.divf %135, %136 : vector<8x128xf32>
    %138 = vector.extract_strided_slice %131 {offsets = [0, 128], sizes = [8, 128], strides = [1, 1]} : vector<8x512xf32> to vector<8x128xf32>
    %139 = arith.negf %138 : vector<8x128xf32>
    %140 = math.exp %139 : vector<8x128xf32>
    %cst_38 = arith.constant 1.000000e+00 : f32
    %141 = vector.broadcast %cst_38 : f32 to vector<8x128xf32>
    %142 = arith.addf %141, %140 : vector<8x128xf32>
    %143 = arith.divf %141, %142 : vector<8x128xf32>
    %144 = vector.extract_strided_slice %131 {offsets = [0, 256], sizes = [8, 128], strides = [1, 1]} : vector<8x512xf32> to vector<8x128xf32>
    %145 = math.tanh %144 : vector<8x128xf32>
    %146 = vector.extract_strided_slice %131 {offsets = [0, 384], sizes = [8, 128], strides = [1, 1]} : vector<8x512xf32> to vector<8x128xf32>
    %147 = arith.negf %146 : vector<8x128xf32>
    %148 = math.exp %147 : vector<8x128xf32>
    %cst_39 = arith.constant 1.000000e+00 : f32
    %149 = vector.broadcast %cst_39 : f32 to vector<8x128xf32>
    %150 = arith.addf %149, %148 : vector<8x128xf32>
    %151 = arith.divf %149, %150 : vector<8x128xf32>
    %152 = arith.mulf %143, %121 : vector<8x128xf32>
    %153 = arith.mulf %137, %145 : vector<8x128xf32>
    %154 = arith.addf %152, %153 : vector<8x128xf32>
    %155 = math.tanh %154 : vector<8x128xf32>
    %156 = arith.mulf %151, %155 : vector<8x128xf32>
    %c4_i32_40 = arith.constant 4 : i32
    %157 = arith.muli %arg0, %c4_i32_40 : i32
    %158 = arith.addi %157, %c3_i32 : i32
    %c10_i32_41 = arith.constant 10 : i32
    %159 = arith.cmpi slt, %158, %c10_i32_41 : i32
    %160 = arith.select %159, %156, %120 : vector<8x128xf32>
    %161 = arith.select %159, %154, %121 : vector<8x128xf32>
    %162 = arith.index_cast %c3_i32 : i32 to index
    %c0_42 = arith.constant 0 : index
    %c0_43 = arith.constant 0 : index
    %163 = vector.load %arg3[%162, %c0_42, %c0_43] : memref<4x8x128xf32, #tpu.memory_space<vmem>>, vector<1x8x128xf32>
    %164 = vector.shape_cast %163 : vector<1x8x128xf32> to vector<8x128xf32>
    %165 = vector.shape_cast %160 : vector<8x128xf32> to vector<1x8x128xf32>
    tpu.vector_store %arg3[%162, %c0_42, %c0_43], %165 {strides = array<i32>} : memref<4x8x128xf32, #tpu.memory_space<vmem>>, vector<1x8x128xf32>,
    %c4_i32_44 = arith.constant 4 : i32
    %c0_45 = arith.constant 0 : index
    %c0_46 = arith.constant 0 : index
    %166 = vector.load %arg6[%c0_45, %c0_46] : memref<8x128xf32, #tpu.memory_space<vmem>>, vector<8x128xf32>
    tpu.vector_store %arg6[%c0_45, %c0_46], %160 {strides = array<i32>} : memref<8x128xf32, #tpu.memory_space<vmem>>, vector<8x128xf32>,
    %c0_47 = arith.constant 0 : index
    %c0_48 = arith.constant 0 : index
    %167 = vector.load %arg7[%c0_47, %c0_48] : memref<8x128xf32, #tpu.memory_space<vmem>>, vector<8x128xf32>
    tpu.vector_store %arg7[%c0_47, %c0_48], %161 {strides = array<i32>} : memref<8x128xf32, #tpu.memory_space<vmem>>, vector<8x128xf32>,
    %c2_i32_49 = arith.constant 2 : i32
    %168 = arith.cmpi eq, %arg0, %c2_i32_49 : i32
    %169 = arith.extui %168 : i1 to i32
    %c0_i32_50 = arith.constant 0 : i32
    %170 = arith.cmpi ne, %169, %c0_i32_50 : i32
    scf.if %170 {
      %c0_51 = arith.constant 0 : index
      %c0_52 = arith.constant 0 : index
      %171 = vector.load %arg4[%c0_51, %c0_52] : memref<8x128xf32, #tpu.memory_space<vmem>>, vector<8x128xf32>
      tpu.vector_store %arg4[%c0_51, %c0_52], %160 {strides = array<i32>} : memref<8x128xf32, #tpu.memory_space<vmem>>, vector<8x128xf32>,
      %c0_53 = arith.constant 0 : index
      %c0_54 = arith.constant 0 : index
      %172 = vector.load %arg5[%c0_53, %c0_54] : memref<8x128xf32, #tpu.memory_space<vmem>>, vector<8x128xf32>
      tpu.vector_store %arg5[%c0_53, %c0_54], %161 {strides = array<i32>} : memref<8x128xf32, #tpu.memory_space<vmem>>, vector<8x128xf32>,
    } else {
    }
    return
  }
  func.func @transform_0(%arg0: i32) -> (i32, i32, i32) {
    %c0_i32 = arith.constant 0 : i32
    %c0_i32_0 = arith.constant 0 : i32
    %c0_i32_1 = arith.constant 0 : i32
    return %arg0, %c0_i32, %c0_i32_0 : i32, i32, i32
  }
  func.func @transform_1(%arg0: i32) -> (i32, i32) {
    %c0_i32 = arith.constant 0 : i32
    %c0_i32_0 = arith.constant 0 : i32
    %c0_i32_1 = arith.constant 0 : i32
    return %c0_i32, %c0_i32_0 : i32, i32
  }
  func.func @transform_2(%arg0: i32) -> (i32, i32, i32) {
    %c0_i32 = arith.constant 0 : i32
    %c0_i32_0 = arith.constant 0 : i32
    %c0_i32_1 = arith.constant 0 : i32
    return %arg0, %c0_i32, %c0_i32_0 : i32, i32, i32
  }
  func.func @transform_3(%arg0: i32) -> (i32, i32) {
    %c0_i32 = arith.constant 0 : i32
    %c0_i32_0 = arith.constant 0 : i32
    %c0_i32_1 = arith.constant 0 : i32
    return %c0_i32, %c0_i32_0 : i32, i32
  }
  func.func @transform_4(%arg0: i32) -> (i32, i32) {
    %c0_i32 = arith.constant 0 : i32
    %c0_i32_0 = arith.constant 0 : i32
    %c0_i32_1 = arith.constant 0 : i32
    return %c0_i32, %c0_i32_0 : i32, i32
  }
}

module attributes {stable_mosaic.version = 11 : i64} {
  func.func @_lstm_rnn_kernel(%arg0: i32, %arg1: memref<4x8x512xf32, #tpu.memory_space<vmem>>, %arg2: memref<128x512xbf16, #tpu.memory_space<vmem>>, %arg3: memref<4x8x128xf32, #tpu.memory_space<vmem>>, %arg4: memref<8x128xf32, #tpu.memory_space<vmem>>, %arg5: memref<8x128xf32, #tpu.memory_space<vmem>>, %arg6: memref<8x128xf32, #tpu.memory_space<vmem>>, %arg7: memref<8x128xf32, #tpu.memory_space<vmem>>) attributes {dimension_semantics = [#tpu.dimension_semantics<arbitrary>], iteration_bounds = array<i64: 3>, scalar_prefetch = 0 : i64, scratch_operands = 2 : i64, tpu.core_type = #tpu.core_type<tc>, window_params = [{transform_indices = @transform_0, window_bounds = array<i64: 4, 8, 512>}, {pipeline_mode = #tpu.pipeline_mode<synchronous>, transform_indices = @transform_1, window_bounds = array<i64: 128, 512>}, {transform_indices = @transform_2, window_bounds = array<i64: 4, 8, 128>}, {pipeline_mode = #tpu.pipeline_mode<synchronous>, transform_indices = @transform_3, window_bounds = array<i64: 8, 128>}, {pipeline_mode = #tpu.pipeline_mode<synchronous>, transform_indices = @transform_4, window_bounds = array<i64: 8, 128>}]} {
    %c0_i32 = arith.constant 0 : i32
    %0 = arith.cmpi eq, %arg0, %c0_i32 : i32
    %1 = arith.extui %0 : i1 to i32
    %c0_i32_0 = arith.constant 0 : i32
    %2 = arith.cmpi ne, %1, %c0_i32_0 : i32
    scf.if %2 {
      %cst_51 = arith.constant 0.000000e+00 : f32
      %171 = vector.broadcast %cst_51 : f32 to vector<8x128xf32>
      %c0_52 = arith.constant 0 : index
      %c0_53 = arith.constant 0 : index
      %172 = vector.load %arg6[%c0_52, %c0_53] : memref<8x128xf32, #tpu.memory_space<vmem>>, vector<8x128xf32>
      tpu.vector_store %arg6[%c0_52, %c0_53], %171 {strides = array<i32>} : memref<8x128xf32, #tpu.memory_space<vmem>>, vector<8x128xf32>,
      %cst_54 = arith.constant 0.000000e+00 : f32
      %173 = vector.broadcast %cst_54 : f32 to vector<8x128xf32>
      %c0_55 = arith.constant 0 : index
      %c0_56 = arith.constant 0 : index
      %174 = vector.load %arg7[%c0_55, %c0_56] : memref<8x128xf32, #tpu.memory_space<vmem>>, vector<8x128xf32>
      tpu.vector_store %arg7[%c0_55, %c0_56], %173 {strides = array<i32>} : memref<8x128xf32, #tpu.memory_space<vmem>>, vector<8x128xf32>,
    } else {
    }
    %c0 = arith.constant 0 : index
    %c0_1 = arith.constant 0 : index
    %3 = vector.load %arg2[%c0, %c0_1] : memref<128x512xbf16, #tpu.memory_space<vmem>>, vector<128x512xbf16>
    %c0_2 = arith.constant 0 : index
    %c0_3 = arith.constant 0 : index
    %4 = vector.load %arg6[%c0_2, %c0_3] : memref<8x128xf32, #tpu.memory_space<vmem>>, vector<8x128xf32>
    %c0_4 = arith.constant 0 : index
    %c0_5 = arith.constant 0 : index
    %5 = vector.load %arg7[%c0_4, %c0_5] : memref<8x128xf32, #tpu.memory_space<vmem>>, vector<8x128xf32>
    %c0_i32_6 = arith.constant 0 : i32
    %6 = arith.truncf %4 : vector<8x128xf32> to vector<8x128xbf16>
    %cst = arith.constant dense<0.000000e+00> : vector<8x512xf32>
    %7 = tpu.matmul %6, %3, %cst {dimension_numbers = #tpu.dot_dimension_numbers<[1], [0], [0], [1], [0, 0, 1, 1], [], []>} : vector<8x128xbf16>, vector<128x512xbf16>, vector<8x512xf32> -> vector<8x512xf32>
    %8 = arith.index_cast %c0_i32_6 : i32 to index
    %c0_7 = arith.constant 0 : index
    %c0_8 = arith.constant 0 : index
    %9 = vector.load %arg1[%8, %c0_7, %c0_8] : memref<4x8x512xf32, #tpu.memory_space<vmem>>, vector<1x8x512xf32>
    %10 = vector.shape_cast %9 : vector<1x8x512xf32> to vector<8x512xf32>
    %11 = arith.addf %7, %10 : vector<8x512xf32>
    %12 = vector.extract_strided_slice %11 {offsets = [0, 0], sizes = [8, 128], strides = [1, 1]} : vector<8x512xf32> to vector<8x128xf32>
    %13 = arith.negf %12 : vector<8x128xf32>
    %14 = math.exp %13 : vector<8x128xf32>
    %cst_9 = arith.constant 1.000000e+00 : f32
    %15 = vector.broadcast %cst_9 : f32 to vector<8x128xf32>
    %16 = arith.addf %15, %14 : vector<8x128xf32>
    %17 = arith.divf %15, %16 : vector<8x128xf32>
    %18 = vector.extract_strided_slice %11 {offsets = [0, 128], sizes = [8, 128], strides = [1, 1]} : vector<8x512xf32> to vector<8x128xf32>
    %19 = arith.negf %18 : vector<8x128xf32>
    %20 = math.exp %19 : vector<8x128xf32>
    %cst_10 = arith.constant 1.000000e+00 : f32
    %21 = vector.broadcast %cst_10 : f32 to vector<8x128xf32>
    %22 = arith.addf %21, %20 : vector<8x128xf32>
    %23 = arith.divf %21, %22 : vector<8x128xf32>
    %24 = vector.extract_strided_slice %11 {offsets = [0, 256], sizes = [8, 128], strides = [1, 1]} : vector<8x512xf32> to vector<8x128xf32>
    %25 = math.tanh %24 : vector<8x128xf32>
    %26 = vector.extract_strided_slice %11 {offsets = [0, 384], sizes = [8, 128], strides = [1, 1]} : vector<8x512xf32> to vector<8x128xf32>
    %27 = arith.negf %26 : vector<8x128xf32>
    %28 = math.exp %27 : vector<8x128xf32>
    %cst_11 = arith.constant 1.000000e+00 : f32
    %29 = vector.broadcast %cst_11 : f32 to vector<8x128xf32>
    %30 = arith.addf %29, %28 : vector<8x128xf32>
    %31 = arith.divf %29, %30 : vector<8x128xf32>
    %32 = arith.mulf %23, %5 : vector<8x128xf32>
    %33 = arith.mulf %17, %25 : vector<8x128xf32>
    %34 = arith.addf %32, %33 : vector<8x128xf32>
    %35 = math.tanh %34 : vector<8x128xf32>
    %36 = arith.mulf %31, %35 : vector<8x128xf32>
    %c4_i32 = arith.constant 4 : i32
    %37 = arith.muli %arg0, %c4_i32 : i32
    %38 = arith.addi %37, %c0_i32_6 : i32
    %c10_i32 = arith.constant 10 : i32
    %39 = arith.cmpi slt, %38, %c10_i32 : i32
    %40 = arith.select %39, %36, %4 : vector<8x128xf32>
    %41 = arith.select %39, %34, %5 : vector<8x128xf32>
    %42 = arith.index_cast %c0_i32_6 : i32 to index
    %c0_12 = arith.constant 0 : index
    %c0_13 = arith.constant 0 : index
    %43 = vector.load %arg3[%42, %c0_12, %c0_13] : memref<4x8x128xf32, #tpu.memory_space<vmem>>, vector<1x8x128xf32>
    %44 = vector.shape_cast %43 : vector<1x8x128xf32> to vector<8x128xf32>
    %45 = vector.shape_cast %40 : vector<8x128xf32> to vector<1x8x128xf32>
    tpu.vector_store %arg3[%42, %c0_12, %c0_13], %45 {strides = array<i32>} : memref<4x8x128xf32, #tpu.memory_space<vmem>>, vector<1x8x128xf32>,
    %c1_i32 = arith.constant 1 : i32
    %46 = arith.truncf %40 : vector<8x128xf32> to vector<8x128xbf16>
    %cst_14 = arith.constant dense<0.000000e+00> : vector<8x512xf32>
    %47 = tpu.matmul %46, %3, %cst_14 {dimension_numbers = #tpu.dot_dimension_numbers<[1], [0], [0], [1], [0, 0, 1, 1], [], []>} : vector<8x128xbf16>, vector<128x512xbf16>, vector<8x512xf32> -> vector<8x512xf32>
    %48 = arith.index_cast %c1_i32 : i32 to index
    %c0_15 = arith.constant 0 : index
    %c0_16 = arith.constant 0 : index
    %49 = vector.load %arg1[%48, %c0_15, %c0_16] : memref<4x8x512xf32, #tpu.memory_space<vmem>>, vector<1x8x512xf32>
    %50 = vector.shape_cast %49 : vector<1x8x512xf32> to vector<8x512xf32>
    %51 = arith.addf %47, %50 : vector<8x512xf32>
    %52 = vector.extract_strided_slice %51 {offsets = [0, 0], sizes = [8, 128], strides = [1, 1]} : vector<8x512xf32> to vector<8x128xf32>
    %53 = arith.negf %52 : vector<8x128xf32>
    %54 = math.exp %53 : vector<8x128xf32>
    %cst_17 = arith.constant 1.000000e+00 : f32
    %55 = vector.broadcast %cst_17 : f32 to vector<8x128xf32>
    %56 = arith.addf %55, %54 : vector<8x128xf32>
    %57 = arith.divf %55, %56 : vector<8x128xf32>
    %58 = vector.extract_strided_slice %51 {offsets = [0, 128], sizes = [8, 128], strides = [1, 1]} : vector<8x512xf32> to vector<8x128xf32>
    %59 = arith.negf %58 : vector<8x128xf32>
    %60 = math.exp %59 : vector<8x128xf32>
    %cst_18 = arith.constant 1.000000e+00 : f32
    %61 = vector.broadcast %cst_18 : f32 to vector<8x128xf32>
    %62 = arith.addf %61, %60 : vector<8x128xf32>
    %63 = arith.divf %61, %62 : vector<8x128xf32>
    %64 = vector.extract_strided_slice %51 {offsets = [0, 256], sizes = [8, 128], strides = [1, 1]} : vector<8x512xf32> to vector<8x128xf32>
    %65 = math.tanh %64 : vector<8x128xf32>
    %66 = vector.extract_strided_slice %51 {offsets = [0, 384], sizes = [8, 128], strides = [1, 1]} : vector<8x512xf32> to vector<8x128xf32>
    %67 = arith.negf %66 : vector<8x128xf32>
    %68 = math.exp %67 : vector<8x128xf32>
    %cst_19 = arith.constant 1.000000e+00 : f32
    %69 = vector.broadcast %cst_19 : f32 to vector<8x128xf32>
    %70 = arith.addf %69, %68 : vector<8x128xf32>
    %71 = arith.divf %69, %70 : vector<8x128xf32>
    %72 = arith.mulf %63, %41 : vector<8x128xf32>
    %73 = arith.mulf %57, %65 : vector<8x128xf32>
    %74 = arith.addf %72, %73 : vector<8x128xf32>
    %75 = math.tanh %74 : vector<8x128xf32>
    %76 = arith.mulf %71, %75 : vector<8x128xf32>
    %c4_i32_20 = arith.constant 4 : i32
    %77 = arith.muli %arg0, %c4_i32_20 : i32
    %78 = arith.addi %77, %c1_i32 : i32
    %c10_i32_21 = arith.constant 10 : i32
    %79 = arith.cmpi slt, %78, %c10_i32_21 : i32
    %80 = arith.select %79, %76, %40 : vector<8x128xf32>
    %81 = arith.select %79, %74, %41 : vector<8x128xf32>
    %82 = arith.index_cast %c1_i32 : i32 to index
    %c0_22 = arith.constant 0 : index
    %c0_23 = arith.constant 0 : index
    %83 = vector.load %arg3[%82, %c0_22, %c0_23] : memref<4x8x128xf32, #tpu.memory_space<vmem>>, vector<1x8x128xf32>
    %84 = vector.shape_cast %83 : vector<1x8x128xf32> to vector<8x128xf32>
    %85 = vector.shape_cast %80 : vector<8x128xf32> to vector<1x8x128xf32>
    tpu.vector_store %arg3[%82, %c0_22, %c0_23], %85 {strides = array<i32>} : memref<4x8x128xf32, #tpu.memory_space<vmem>>, vector<1x8x128xf32>,
    %c2_i32 = arith.constant 2 : i32
    %86 = arith.truncf %80 : vector<8x128xf32> to vector<8x128xbf16>
    %cst_24 = arith.constant dense<0.000000e+00> : vector<8x512xf32>
    %87 = tpu.matmul %86, %3, %cst_24 {dimension_numbers = #tpu.dot_dimension_numbers<[1], [0], [0], [1], [0, 0, 1, 1], [], []>} : vector<8x128xbf16>, vector<128x512xbf16>, vector<8x512xf32> -> vector<8x512xf32>
    %88 = arith.index_cast %c2_i32 : i32 to index
    %c0_25 = arith.constant 0 : index
    %c0_26 = arith.constant 0 : index
    %89 = vector.load %arg1[%88, %c0_25, %c0_26] : memref<4x8x512xf32, #tpu.memory_space<vmem>>, vector<1x8x512xf32>
    %90 = vector.shape_cast %89 : vector<1x8x512xf32> to vector<8x512xf32>
    %91 = arith.addf %87, %90 : vector<8x512xf32>
    %92 = vector.extract_strided_slice %91 {offsets = [0, 0], sizes = [8, 128], strides = [1, 1]} : vector<8x512xf32> to vector<8x128xf32>
    %93 = arith.negf %92 : vector<8x128xf32>
    %94 = math.exp %93 : vector<8x128xf32>
    %cst_27 = arith.constant 1.000000e+00 : f32
    %95 = vector.broadcast %cst_27 : f32 to vector<8x128xf32>
    %96 = arith.addf %95, %94 : vector<8x128xf32>
    %97 = arith.divf %95, %96 : vector<8x128xf32>
    %98 = vector.extract_strided_slice %91 {offsets = [0, 128], sizes = [8, 128], strides = [1, 1]} : vector<8x512xf32> to vector<8x128xf32>
    %99 = arith.negf %98 : vector<8x128xf32>
    %100 = math.exp %99 : vector<8x128xf32>
    %cst_28 = arith.constant 1.000000e+00 : f32
    %101 = vector.broadcast %cst_28 : f32 to vector<8x128xf32>
    %102 = arith.addf %101, %100 : vector<8x128xf32>
    %103 = arith.divf %101, %102 : vector<8x128xf32>
    %104 = vector.extract_strided_slice %91 {offsets = [0, 256], sizes = [8, 128], strides = [1, 1]} : vector<8x512xf32> to vector<8x128xf32>
    %105 = math.tanh %104 : vector<8x128xf32>
    %106 = vector.extract_strided_slice %91 {offsets = [0, 384], sizes = [8, 128], strides = [1, 1]} : vector<8x512xf32> to vector<8x128xf32>
    %107 = arith.negf %106 : vector<8x128xf32>
    %108 = math.exp %107 : vector<8x128xf32>
    %cst_29 = arith.constant 1.000000e+00 : f32
    %109 = vector.broadcast %cst_29 : f32 to vector<8x128xf32>
    %110 = arith.addf %109, %108 : vector<8x128xf32>
    %111 = arith.divf %109, %110 : vector<8x128xf32>
    %112 = arith.mulf %103, %81 : vector<8x128xf32>
    %113 = arith.mulf %97, %105 : vector<8x128xf32>
    %114 = arith.addf %112, %113 : vector<8x128xf32>
    %115 = math.tanh %114 : vector<8x128xf32>
    %116 = arith.mulf %111, %115 : vector<8x128xf32>
    %c4_i32_30 = arith.constant 4 : i32
    %117 = arith.muli %arg0, %c4_i32_30 : i32
    %118 = arith.addi %117, %c2_i32 : i32
    %c10_i32_31 = arith.constant 10 : i32
    %119 = arith.cmpi slt, %118, %c10_i32_31 : i32
    %120 = arith.select %119, %116, %80 : vector<8x128xf32>
    %121 = arith.select %119, %114, %81 : vector<8x128xf32>
    %122 = arith.index_cast %c2_i32 : i32 to index
    %c0_32 = arith.constant 0 : index
    %c0_33 = arith.constant 0 : index
    %123 = vector.load %arg3[%122, %c0_32, %c0_33] : memref<4x8x128xf32, #tpu.memory_space<vmem>>, vector<1x8x128xf32>
    %124 = vector.shape_cast %123 : vector<1x8x128xf32> to vector<8x128xf32>
    %125 = vector.shape_cast %120 : vector<8x128xf32> to vector<1x8x128xf32>
    tpu.vector_store %arg3[%122, %c0_32, %c0_33], %125 {strides = array<i32>} : memref<4x8x128xf32, #tpu.memory_space<vmem>>, vector<1x8x128xf32>,
    %c3_i32 = arith.constant 3 : i32
    %126 = arith.truncf %120 : vector<8x128xf32> to vector<8x128xbf16>
    %cst_34 = arith.constant dense<0.000000e+00> : vector<8x512xf32>
    %127 = tpu.matmul %126, %3, %cst_34 {dimension_numbers = #tpu.dot_dimension_numbers<[1], [0], [0], [1], [0, 0, 1, 1], [], []>} : vector<8x128xbf16>, vector<128x512xbf16>, vector<8x512xf32> -> vector<8x512xf32>
    %128 = arith.index_cast %c3_i32 : i32 to index
    %c0_35 = arith.constant 0 : index
    %c0_36 = arith.constant 0 : index
    %129 = vector.load %arg1[%128, %c0_35, %c0_36] : memref<4x8x512xf32, #tpu.memory_space<vmem>>, vector<1x8x512xf32>
    %130 = vector.shape_cast %129 : vector<1x8x512xf32> to vector<8x512xf32>
    %131 = arith.addf %127, %130 : vector<8x512xf32>
    %132 = vector.extract_strided_slice %131 {offsets = [0, 0], sizes = [8, 128], strides = [1, 1]} : vector<8x512xf32> to vector<8x128xf32>
    %133 = arith.negf %132 : vector<8x128xf32>
    %134 = math.exp %133 : vector<8x128xf32>
    %cst_37 = arith.constant 1.000000e+00 : f32
    %135 = vector.broadcast %cst_37 : f32 to vector<8x128xf32>
    %136 = arith.addf %135, %134 : vector<8x128xf32>
    %137 = arith.divf %135, %136 : vector<8x128xf32>
    %138 = vector.extract_strided_slice %131 {offsets = [0, 128], sizes = [8, 128], strides = [1, 1]} : vector<8x512xf32> to vector<8x128xf32>
    %139 = arith.negf %138 : vector<8x128xf32>
    %140 = math.exp %139 : vector<8x128xf32>
    %cst_38 = arith.constant 1.000000e+00 : f32
    %141 = vector.broadcast %cst_38 : f32 to vector<8x128xf32>
    %142 = arith.addf %141, %140 : vector<8x128xf32>
    %143 = arith.divf %141, %142 : vector<8x128xf32>
    %144 = vector.extract_strided_slice %131 {offsets = [0, 256], sizes = [8, 128], strides = [1, 1]} : vector<8x512xf32> to vector<8x128xf32>
    %145 = math.tanh %144 : vector<8x128xf32>
    %146 = vector.extract_strided_slice %131 {offsets = [0, 384], sizes = [8, 128], strides = [1, 1]} : vector<8x512xf32> to vector<8x128xf32>
    %147 = arith.negf %146 : vector<8x128xf32>
    %148 = math.exp %147 : vector<8x128xf32>
    %cst_39 = arith.constant 1.000000e+00 : f32
    %149 = vector.broadcast %cst_39 : f32 to vector<8x128xf32>
    %150 = arith.addf %149, %148 : vector<8x128xf32>
    %151 = arith.divf %149, %150 : vector<8x128xf32>
    %152 = arith.mulf %143, %121 : vector<8x128xf32>
    %153 = arith.mulf %137, %145 : vector<8x128xf32>
    %154 = arith.addf %152, %153 : vector<8x128xf32>
    %155 = math.tanh %154 : vector<8x128xf32>
    %156 = arith.mulf %151, %155 : vector<8x128xf32>
    %c4_i32_40 = arith.constant 4 : i32
    %157 = arith.muli %arg0, %c4_i32_40 : i32
    %158 = arith.addi %157, %c3_i32 : i32
    %c10_i32_41 = arith.constant 10 : i32
    %159 = arith.cmpi slt, %158, %c10_i32_41 : i32
    %160 = arith.select %159, %156, %120 : vector<8x128xf32>
    %161 = arith.select %159, %154, %121 : vector<8x128xf32>
    %162 = arith.index_cast %c3_i32 : i32 to index
    %c0_42 = arith.constant 0 : index
    %c0_43 = arith.constant 0 : index
    %163 = vector.load %arg3[%162, %c0_42, %c0_43] : memref<4x8x128xf32, #tpu.memory_space<vmem>>, vector<1x8x128xf32>
    %164 = vector.shape_cast %163 : vector<1x8x128xf32> to vector<8x128xf32>
    %165 = vector.shape_cast %160 : vector<8x128xf32> to vector<1x8x128xf32>
    tpu.vector_store %arg3[%162, %c0_42, %c0_43], %165 {strides = array<i32>} : memref<4x8x128xf32, #tpu.memory_space<vmem>>, vector<1x8x128xf32>,
    %c4_i32_44 = arith.constant 4 : i32
    %c0_45 = arith.constant 0 : index
    %c0_46 = arith.constant 0 : index
    %166 = vector.load %arg6[%c0_45, %c0_46] : memref<8x128xf32, #tpu.memory_space<vmem>>, vector<8x128xf32>
    tpu.vector_store %arg6[%c0_45, %c0_46], %160 {strides = array<i32>} : memref<8x128xf32, #tpu.memory_space<vmem>>, vector<8x128xf32>,
    %c0_47 = arith.constant 0 : index
    %c0_48 = arith.constant 0 : index
    %167 = vector.load %arg7[%c0_47, %c0_48] : memref<8x128xf32, #tpu.memory_space<vmem>>, vector<8x128xf32>
    tpu.vector_store %arg7[%c0_47, %c0_48], %161 {strides = array<i32>} : memref<8x128xf32, #tpu.memory_space<vmem>>, vector<8x128xf32>,
    %c2_i32_49 = arith.constant 2 : i32
    %168 = arith.cmpi eq, %arg0, %c2_i32_49 : i32
    %169 = arith.extui %168 : i1 to i32
    %c0_i32_50 = arith.constant 0 : i32
    %170 = arith.cmpi ne, %169, %c0_i32_50 : i32
    scf.if %170 {
      %c0_51 = arith.constant 0 : index
      %c0_52 = arith.constant 0 : index
      %171 = vector.load %arg4[%c0_51, %c0_52] : memref<8x128xf32, #tpu.memory_space<vmem>>, vector<8x128xf32>
      tpu.vector_store %arg4[%c0_51, %c0_52], %160 {strides = array<i32>} : memref<8x128xf32, #tpu.memory_space<vmem>>, vector<8x128xf32>,
      %c0_53 = arith.constant 0 : index
      %c0_54 = arith.constant 0 : index
      %172 = vector.load %arg5[%c0_53, %c0_54] : memref<8x128xf32, #tpu.memory_space<vmem>>, vector<8x128xf32>
      tpu.vector_store %arg5[%c0_53, %c0_54], %161 {strides = array<i32>} : memref<8x128xf32, #tpu.memory_space<vmem>>, vector<8x128xf32>,
    } else {
    }
    return
  }
  func.func @transform_0(%arg0: i32) -> (i32, i32, i32) {
    %c0_i32 = arith.constant 0 : i32
    %c0_i32_0 = arith.constant 0 : i32
    %c0_i32_1 = arith.constant 0 : i32
    return %arg0, %c0_i32, %c0_i32_0 : i32, i32, i32
  }
  func.func @transform_1(%arg0: i32) -> (i32, i32) {
    %c0_i32 = arith.constant 0 : i32
    %c0_i32_0 = arith.constant 0 : i32
    %c0_i32_1 = arith.constant 0 : i32
    return %c0_i32, %c0_i32_0 : i32, i32
  }
  func.func @transform_2(%arg0: i32) -> (i32, i32, i32) {
    %c0_i32 = arith.constant 0 : i32
    %c0_i32_0 = arith.constant 0 : i32
    %c0_i32_1 = arith.constant 0 : i32
    return %arg0, %c0_i32, %c0_i32_0 : i32, i32, i32
  }
  func.func @transform_3(%arg0: i32) -> (i32, i32) {
    %c0_i32 = arith.constant 0 : i32
    %c0_i32_0 = arith.constant 0 : i32
    %c0_i32_1 = arith.constant 0 : i32
    return %c0_i32, %c0_i32_0 : i32, i32
  }
  func.func @transform_4(%arg0: i32) -> (i32, i32) {
    %c0_i32 = arith.constant 0 : i32
    %c0_i32_0 = arith.constant 0 : i32
    %c0_i32_1 = arith.constant 0 : i32
    return %c0_i32, %c0_i32_0 : i32, i32
  }
}

</mosaic_0001>

<llo_original>
// kernel: encoder_forward.4
$region0: #{encoder_forward.4}
  #allocation0 [shape = 'u32[]', space=smem, size = 0x4, offset = 0x4, fixed_abs, tag = 'smem constant byte address 0x4 - core index']
  #allocation1 [shape = 'u32[144,128]{1,0:T(1,128)}', space=vmem, size = 0x12000, scoped, tag = 'internal scratch']
  %s0 = inlined_call_operand.vmem [shape: bf16[80,32], index: 0, kind: input, shape index: {}]
  %s1 = inlined_call_operand.vmem [shape: bf16[32,512], index: 1, kind: input, shape index: {}]
  %s2 = inlined_call_operand.vmem [shape: f32[1,512], index: 2, kind: input, shape index: {}]
  %s3 = inlined_call_operand.vmem [shape: f32[80,512], index: 3, kind: output, shape index: {}]
  %s4 = sld [smem:[#allocation0]]
  $region22: #{encoder_forward.4} parent=0
    _
  %s6 = ssub.s32 1, %s4
  %s7 = scalar_select 0, %s6, %s4
  // Predicated region
  $region2: #{encoder_forward.4} parent=0 // pred_check
    _
  $region3: #{encoder_forward.4} parent=0 // pred_check_branch
    %9 = sbr.rel (0) target = $region5
  $region4: #{encoder_forward.4} parent=0 // pred_region
    _
  $region5: #{encoder_forward.4} parent=0 // pred_fallthru
    _
  // Predicated region
  $region6: #{encoder_forward.4} parent=0 // pred_check
    _
  $region7: #{encoder_forward.4} parent=0 // pred_check_branch
    %11 = sbr.rel (0) target = $region9
  $region8: #{encoder_forward.4} parent=0 // pred_region
    _
  $region9: #{encoder_forward.4} parent=0 // pred_fallthru
    _
  // Predicated region
  $region10: #{encoder_forward.4} parent=0 // pred_check
    _
  $region11: #{encoder_forward.4} parent=0 // pred_check_branch
    %13 = sbr.rel (0) target = $region13
  $region12: #{encoder_forward.4} parent=0 // pred_region
    _
  $region13: #{encoder_forward.4} parent=0 // pred_fallthru
    _
  %v15 = vld [vmem:[%s0] sm:$0xf]
  %v16 = vld [vmem:[%s0 + $0x4] sm:$0xf]
  %v17 = vld [vmem:[%s0 + $0x8] sm:$0xf]
  %v18 = vld [vmem:[%s0 + $0xc] sm:$0xf]
  %v19 = vld [vmem:[%s0 + $0x10] sm:$0xf]
  %v20 = vld [vmem:[%s0 + $0x14] sm:$0xf]
  %v21 = vld [vmem:[%s0 + $0x18] sm:$0xf]
  %v22 = vld [vmem:[%s0 + $0x1c] sm:$0xf]
  %v23 = vld [vmem:[%s0 + $0x20] sm:$0xf]
  %v24 = vld [vmem:[%s0 + $0x24] sm:$0xf]
  %v25 = vld [vmem:[%s1] sm:$0xff]
  %v26 = vld [vmem:[%s1 + $0x8] sm:$0xff]
  %v27 = vld [vmem:[%s1 + $0x10] sm:$0xff]
  %v28 = vld [vmem:[%s1 + $0x18] sm:$0xff]
  %v29 = vld [vmem:[%s1 + $0x20] sm:$0xff]
  %v30 = vld [vmem:[%s1 + $0x28] sm:$0xff]
  %v31 = vld [vmem:[%s1 + $0x30] sm:$0xff]
  %v32 = vld [vmem:[%s1 + $0x38] sm:$0xff]
  %v33 = vld [vmem:[%s2] sm:$0xf]
  %v35 = vlaneseq
  %v36 = vshrl.u32 %v35, 7
  %v37 = vsub.s32 0, %v36
  %v38 = vrot.slane %v33, %v37
  %v39 = vlaneseq
  %v40 = vshrl.u32 %v39, 7
  %v41 = vsub.s32 1, %v40
  %v42 = vrot.slane %v33, %v41
  %v43 = vlaneseq
  %v44 = vshrl.u32 %v43, 7
  %v45 = vsub.s32 2, %v44
  %v46 = vrot.slane %v33, %v45
  %v47 = vlaneseq
  %v48 = vshrl.u32 %v47, 7
  %v49 = vsub.s32 3, %v48
  %v50 = vrot.slane %v33, %v49
  %v65 = vunpack.c.l.b16 %v15
  %v66 = vunpack.c.l.b16 %v16
  %v67 = vunpack.c.l.b16 %v17
  %v68 = vunpack.c.l.b16 %v18
  %v69 = vunpack.c.l.b16 %v19
  %v70 = vunpack.c.l.b16 %v20
  %v71 = vunpack.c.l.b16 %v21
  %v72 = vunpack.c.l.b16 %v22
  %v73 = vunpack.c.l.b16 %v23
  %v74 = vunpack.c.l.b16 %v24
  %v75 = vpack.c.b16 %v66, %v65
  %v76 = vpack.c.b16 %v68, %v67
  %v77 = vpack.c.b16 %v70, %v69
  %v78 = vpack.c.b16 %v72, %v71
  %v79 = vpack.c.b16 %v74, %v73
  %v88 = vunpack.c.l.b16 %v25
  %v89 = vunpack.c.h.b16 %v25
  %v90 = vunpack.c.l.b16 %v26
  %v91 = vunpack.c.h.b16 %v26
  %v92 = vunpack.c.l.b16 %v27
  %v93 = vunpack.c.h.b16 %v27
  %v94 = vunpack.c.l.b16 %v28
  %v95 = vunpack.c.h.b16 %v28
  %v96 = vunpack.c.l.b16 %v29
  %v97 = vunpack.c.h.b16 %v29
  %v98 = vunpack.c.l.b16 %v30
  %v99 = vunpack.c.h.b16 %v30
  %v100 = vunpack.c.l.b16 %v31
  %v101 = vunpack.c.h.b16 %v31
  %v102 = vunpack.c.l.b16 %v32
  %v103 = vunpack.c.h.b16 %v32
  %v104 = vpack.c.b16 %v92, %v88
  %v105 = vpack.c.b16 %v93, %v89
  %v106 = vpack.c.b16 %v94, %v90
  %v107 = vpack.c.b16 %v95, %v91
  %v108 = vpack.c.b16 %v100, %v96
  %v109 = vpack.c.b16 %v101, %v97
  %v110 = vpack.c.b16 %v102, %v98
  %v111 = vpack.c.b16 %v103, %v99
  %vm120 = vcmask 261120
  %v122 = vsel %vm120, %v75, 0
  %v125 = vsel %vm120, %v76, 0
  %v128 = vsel %vm120, %v77, 0
  %v131 = vsel %vm120, %v78, 0
  %v134 = vsel %vm120, %v79, 0
  %136 = vmatprep.subr.bf16.mxu0 %v105
  %137 = vmatpush1.bf16.msra.mxu0 %v104
  %138 = vmatprep.subr.bf16.mxu0 %v109
  %139 = vmatpush1.bf16.msra.mxu0 %v108
  %140 = vmatprep.subr.bf16.mxu0 0
  %141 = vmatpush1.bf16.msra.mxu0 0
  %142 = vmatprep.subr.bf16.mxu0 0
  %143 = vmatpush1.bf16.msra.mxu0 0
  %144 = vmatprep.subr.bf16.mxu0 0
  %145 = vmatpush1.bf16.msra.mxu0 0
  %146 = vmatprep.subr.bf16.mxu0 0
  %147 = vmatpush1.bf16.msra.mxu0 0
  %148 = vmatprep.subr.bf16.mxu0 0
  %149 = vmatpush1.bf16.msra.mxu0 0
  %150 = vmatprep.subr.bf16.mxu0 0
  %151 = vmatpush1.bf16.msra.mxu0 0
  %152 = vmatprep.subr.bf16.mxu0 0
  %153 = vmatpush1.bf16.msra.mxu0 0
  %154 = vmatprep.subr.bf16.mxu0 0
  %155 = vmatpush1.bf16.msra.mxu0 0
  %156 = vmatprep.subr.bf16.mxu0 0
  %157 = vmatpush1.bf16.msra.mxu0 0
  %158 = vmatprep.subr.bf16.mxu0 0
  %159 = vmatpush1.bf16.msra.mxu0 0
  %160 = vmatprep.subr.bf16.mxu0 0
  %161 = vmatpush1.bf16.msra.mxu0 0
  %162 = vmatprep.subr.bf16.mxu0 0
  %163 = vmatpush1.bf16.msra.mxu0 0
  %164 = vmatprep.subr.bf16.mxu0 0
  %165 = vmatpush1.bf16.msra.mxu0 0
  %166 = vmatprep.subr.bf16.mxu0 0
  %167 = vmatpush1.bf16.msra.mxu0 0
  %168 = vmatprep.mubr.bf16.mxu0 0
  %169 = vmatmul.mubr.bf16.gmra.mrb[0].mxu0 %v122
  %v170 = vpop.f32.mrb[0].mxu0
  %v171 = vadd.f32 %v38, %v170
  %v172 = vpop.f32.mrb[0].mxu0
  %v173 = vadd.f32 %v42, %v172
  %v174 = vpop.f32.mrb[0].mxu0
  %v175 = vadd.f32 %v38, %v174
  %v176 = vpop.f32.mrb[0].mxu0
  %v177 = vadd.f32 %v42, %v176
  %178 = vmatprep.mubr.bf16.mxu0 0
  %179 = vmatmul.mubr.bf16.gmra.mrb[0].mxu0 %v125
  %v180 = vpop.f32.mrb[0].mxu0
  %v181 = vadd.f32 %v38, %v180
  %v182 = vpop.f32.mrb[0].mxu0
  %v183 = vadd.f32 %v42, %v182
  %v184 = vpop.f32.mrb[0].mxu0
  %v185 = vadd.f32 %v38, %v184
  %v186 = vpop.f32.mrb[0].mxu0
  %v187 = vadd.f32 %v42, %v186
  %188 = vmatprep.mubr.bf16.mxu0 0
  %189 = vmatmul.mubr.bf16.gmra.mrb[0].mxu0 %v128
  %v190 = vpop.f32.mrb[0].mxu0
  %v191 = vadd.f32 %v38, %v190
  %v192 = vpop.f32.mrb[0].mxu0
  %v193 = vadd.f32 %v42, %v192
  %v194 = vpop.f32.mrb[0].mxu0
  %v195 = vadd.f32 %v38, %v194
  %v196 = vpop.f32.mrb[0].mxu0
  %v197 = vadd.f32 %v42, %v196
  %198 = vmatprep.mubr.bf16.mxu0 0
  %199 = vmatmul.mubr.bf16.gmra.mrb[0].mxu0 %v131
  %v200 = vpop.f32.mrb[0].mxu0
  %v201 = vadd.f32 %v38, %v200
  %v202 = vpop.f32.mrb[0].mxu0
  %v203 = vadd.f32 %v42, %v202
  %v204 = vpop.f32.mrb[0].mxu0
  %v205 = vadd.f32 %v38, %v204
  %v206 = vpop.f32.mrb[0].mxu0
  %v207 = vadd.f32 %v42, %v206
  %208 = vmatprep.mubr.bf16.mxu0 0
  %209 = vmatmul.mubr.bf16.gmra.mrb[0].mxu0 %v134
  %v210 = vpop.f32.mrb[0].mxu0
  %v211 = vadd.f32 %v38, %v210
  %v212 = vpop.f32.mrb[0].mxu0
  %v213 = vadd.f32 %v42, %v212
  %v214 = vpop.f32.mrb[0].mxu0
  %v215 = vadd.f32 %v38, %v214
  %v216 = vpop.f32.mrb[0].mxu0
  %v217 = vadd.f32 %v42, %v216
  %218 = vdwg.mxu0
  %219 = vmatprep.subr.bf16.mxu0 %v107
  %220 = vmatpush1.bf16.msra.mxu0 %v106
  %221 = vmatprep.subr.bf16.mxu0 %v111
  %222 = vmatpush1.bf16.msra.mxu0 %v110
  %223 = vmatprep.subr.bf16.mxu0 0
  %224 = vmatpush1.bf16.msra.mxu0 0
  %225 = vmatprep.subr.bf16.mxu0 0
  %226 = vmatpush1.bf16.msra.mxu0 0
  %227 = vmatprep.subr.bf16.mxu0 0
  %228 = vmatpush1.bf16.msra.mxu0 0
  %229 = vmatprep.subr.bf16.mxu0 0
  %230 = vmatpush1.bf16.msra.mxu0 0
  %231 = vmatprep.subr.bf16.mxu0 0
  %232 = vmatpush1.bf16.msra.mxu0 0
  %233 = vmatprep.subr.bf16.mxu0 0
  %234 = vmatpush1.bf16.msra.mxu0 0
  %235 = vmatprep.subr.bf16.mxu0 0
  %236 = vmatpush1.bf16.msra.mxu0 0
  %237 = vmatprep.subr.bf16.mxu0 0
  %238 = vmatpush1.bf16.msra.mxu0 0
  %239 = vmatprep.subr.bf16.mxu0 0
  %240 = vmatpush1.bf16.msra.mxu0 0
  %241 = vmatprep.subr.bf16.mxu0 0
  %242 = vmatpush1.bf16.msra.mxu0 0
  %243 = vmatprep.subr.bf16.mxu0 0
  %244 = vmatpush1.bf16.msra.mxu0 0
  %245 = vmatprep.subr.bf16.mxu0 0
  %246 = vmatpush1.bf16.msra.mxu0 0
  %247 = vmatprep.subr.bf16.mxu0 0
  %248 = vmatpush1.bf16.msra.mxu0 0
  %249 = vmatprep.subr.bf16.mxu0 0
  %250 = vmatpush1.bf16.msra.mxu0 0
  %251 = vmatprep.mubr.bf16.mxu0 0
  %252 = vmatmul.mubr.bf16.gmra.mrb[0].mxu0 %v122
  %v253 = vpop.f32.mrb[0].mxu0
  %v254 = vadd.f32 %v46, %v253
  %v255 = vpop.f32.mrb[0].mxu0
  %v256 = vadd.f32 %v50, %v255
  %v257 = vpop.f32.mrb[0].mxu0
  %v258 = vadd.f32 %v46, %v257
  %v259 = vpop.f32.mrb[0].mxu0
  %v260 = vadd.f32 %v50, %v259
  %261 = vmatprep.mubr.bf16.mxu0 0
  %262 = vmatmul.mubr.bf16.gmra.mrb[0].mxu0 %v125
  %v263 = vpop.f32.mrb[0].mxu0
  %v264 = vadd.f32 %v46, %v263
  %v265 = vpop.f32.mrb[0].mxu0
  %v266 = vadd.f32 %v50, %v265
  %v267 = vpop.f32.mrb[0].mxu0
  %v268 = vadd.f32 %v46, %v267
  %v269 = vpop.f32.mrb[0].mxu0
  %v270 = vadd.f32 %v50, %v269
  %271 = vmatprep.mubr.bf16.mxu0 0
  %272 = vmatmul.mubr.bf16.gmra.mrb[0].mxu0 %v128
  %v273 = vpop.f32.mrb[0].mxu0
  %v274 = vadd.f32 %v46, %v273
  %v275 = vpop.f32.mrb[0].mxu0
  %v276 = vadd.f32 %v50, %v275
  %v277 = vpop.f32.mrb[0].mxu0
  %v278 = vadd.f32 %v46, %v277
  %v279 = vpop.f32.mrb[0].mxu0
  %v280 = vadd.f32 %v50, %v279
  %281 = vmatprep.mubr.bf16.mxu0 0
  %282 = vmatmul.mubr.bf16.gmra.mrb[0].mxu0 %v131
  %v283 = vpop.f32.mrb[0].mxu0
  %v284 = vadd.f32 %v46, %v283
  %v285 = vpop.f32.mrb[0].mxu0
  %v286 = vadd.f32 %v50, %v285
  %v287 = vpop.f32.mrb[0].mxu0
  %v288 = vadd.f32 %v46, %v287
  %v289 = vpop.f32.mrb[0].mxu0
  %v290 = vadd.f32 %v50, %v289
  %291 = vmatprep.mubr.bf16.mxu0 0
  %292 = vmatmul.mubr.bf16.gmra.mrb[0].mxu0 %v134
  %v293 = vpop.f32.mrb[0].mxu0
  %v294 = vadd.f32 %v46, %v293
  %v295 = vpop.f32.mrb[0].mxu0
  %v296 = vadd.f32 %v50, %v295
  %v297 = vpop.f32.mrb[0].mxu0
  %v298 = vadd.f32 %v46, %v297
  %v299 = vpop.f32.mrb[0].mxu0
  %v300 = vadd.f32 %v50, %v299
  %301 = vdwg.mxu0
  %302 = vst [vmem:[%s3] sm:$0xff] %v171
  %303 = vst [vmem:[%s3 + $0x8] sm:$0xff] %v173
  %304 = vst [vmem:[%s3 + $0x10] sm:$0xff] %v254
  %305 = vst [vmem:[%s3 + $0x18] sm:$0xff] %v256
  %306 = vst [vmem:[%s3 + $0x20] sm:$0xff] %v175
  %307 = vst [vmem:[%s3 + $0x28] sm:$0xff] %v177
  %308 = vst [vmem:[%s3 + $0x30] sm:$0xff] %v258
  %309 = vst [vmem:[%s3 + $0x38] sm:$0xff] %v260
  %310 = vst [vmem:[%s3 + $0x40] sm:$0xff] %v181
  %311 = vst [vmem:[%s3 + $0x48] sm:$0xff] %v183
  %312 = vst [vmem:[%s3 + $0x50] sm:$0xff] %v264
  %313 = vst [vmem:[%s3 + $0x58] sm:$0xff] %v266
  %314 = vst [vmem:[%s3 + $0x60] sm:$0xff] %v185
  %315 = vst [vmem:[%s3 + $0x68] sm:$0xff] %v187
  %316 = vst [vmem:[%s3 + $0x70] sm:$0xff] %v268
  %317 = vst [vmem:[%s3 + $0x78] sm:$0xff] %v270
  %318 = vst [vmem:[%s3 + $0x80] sm:$0xff] %v191
  %319 = vst [vmem:[%s3 + $0x88] sm:$0xff] %v193
  %320 = vst [vmem:[%s3 + $0x90] sm:$0xff] %v274
  %321 = vst [vmem:[%s3 + $0x98] sm:$0xff] %v276
  %322 = vst [vmem:[%s3 + $0xa0] sm:$0xff] %v195
  %323 = vst [vmem:[%s3 + $0xa8] sm:$0xff] %v197
  %324 = vst [vmem:[%s3 + $0xb0] sm:$0xff] %v278
  %325 = vst [vmem:[%s3 + $0xb8] sm:$0xff] %v280
  %326 = vst [vmem:[%s3 + $0xc0] sm:$0xff] %v201
  %327 = vst [vmem:[%s3 + $0xc8] sm:$0xff] %v203
  %328 = vst [vmem:[%s3 + $0xd0] sm:$0xff] %v284
  %329 = vst [vmem:[%s3 + $0xd8] sm:$0xff] %v286
  %330 = vst [vmem:[%s3 + $0xe0] sm:$0xff] %v205
  %331 = vst [vmem:[%s3 + $0xe8] sm:$0xff] %v207
  %332 = vst [vmem:[%s3 + $0xf0] sm:$0xff] %v288
  %333 = vst [vmem:[%s3 + $0xf8] sm:$0xff] %v290
  %334 = vst [vmem:[%s3 + $0x100] sm:$0xff] %v211
  %335 = vst [vmem:[%s3 + $0x108] sm:$0xff] %v213
  %336 = vst [vmem:[%s3 + $0x110] sm:$0xff] %v294
  %337 = vst [vmem:[%s3 + $0x118] sm:$0xff] %v296
  %338 = vst [vmem:[%s3 + $0x120] sm:$0xff] %v215
  %339 = vst [vmem:[%s3 + $0x128] sm:$0xff] %v217
  %340 = vst [vmem:[%s3 + $0x130] sm:$0xff] %v298
  %341 = vst [vmem:[%s3 + $0x138] sm:$0xff] %v300
  // Predicated region
  $region14: #{encoder_forward.4} parent=0 // pred_check
    _
  $region15: #{encoder_forward.4} parent=0 // pred_check_branch
    %343 = sbr.rel (0) target = $region17
  $region16: #{encoder_forward.4} parent=0 // pred_region
    _
  $region17: #{encoder_forward.4} parent=0 // pred_fallthru
    _
  // Predicated region
  $region18: #{encoder_forward.4} parent=0 // pred_check
    _
  $region19: #{encoder_forward.4} parent=0 // pred_check_branch
    %345 = sbr.rel (0) target = $region21
  $region20: #{encoder_forward.4} parent=0 // pred_region
    _
  $region21: #{encoder_forward.4} parent=0 // pred_fallthru
    _

// kernel: encoder_forward.5
$region0: #{encoder_forward.5}
  #allocation0 [shape = 'u32[]', space=smem, size = 0x4, offset = 0x4, fixed_abs, tag = 'smem constant byte address 0x4 - core index']
  #allocation1 [shape = 'u32[144,128]{1,0:T(1,128)}', space=vmem, size = 0x12000, scoped, tag = 'internal scratch']
  #allocation2 [shape = 'f32[8,128]{1,0:T(8,128)}', space=vmem, size = 0x1000, scoped, tag = 'scratch operand']
  #allocation3 [shape = 'f32[8,128]{1,0:T(8,128)}', space=vmem, size = 0x1000, scoped, tag = 'scratch operand']
  %s0 = inlined_call_operand.vmem [shape: f32[12,8,512], index: 0, kind: input, shape index: {}]
  %s1 = inlined_call_operand.vmem [shape: bf16[128,512], index: 1, kind: input, shape index: {}]
  %s2 = inlined_call_operand.vmem [shape: f32[12,8,128], index: 2, kind: output, shape index: {0}]
  %s3 = inlined_call_operand.vmem [shape: f32[8,128], index: 3, kind: output, shape index: {1}]
  %s4 = inlined_call_operand.vmem [shape: f32[8,128], index: 4, kind: output, shape index: {2}]
  %5 = xla_tuple %s2, %s3, %s4
  %s6 = sld [smem:[#allocation0]]
  $region65: #{encoder_forward.5} parent=0
    _
  %s8 = ssub.s32 1, %s6
  %s9 = scalar_select 0, %s8, %s6
  loop: start=0, step=1, limit=5
  $region2: #{encoder_forward.5} parent=0 // loop_pre_header
    _
  $region3: #{encoder_forward.5} parent=0 // loop_header
    %s11 = sphi 0, %s15
    %p12 = scmp.ge.s32.totalorder %s11, 5
    %s21 = sphi 0, %s23
    %s24 = sphi 0, %s21
    %s25 = sphi 0, %s24
    %s41 = sphi 0, %s25
    %s45 = sphi 0, %s45
    %s47 = sphi 0, %s45
    %s48 = sphi 0, %s47
    %s62 = sphi 0, %s48
    %s68 = sphi 0, %s70
    %s71 = sphi 0, %s68
    %s72 = sphi 0, %s71
    %s88 = sphi 0, %s72
    %s92 = sphi 0, %s92
    %s94 = sphi 0, %s92
    %s95 = sphi 0, %s94
    %s109 = sphi 0, %s95
    %s113 = sphi 0, %s113
    %s115 = sphi 0, %s113
    %s116 = sphi 0, %s115
    %s130 = sphi 0, %s116
  $region4: #{encoder_forward.5} parent=0 // loop_header_branch
    %14 = sbr.rel (%p12) target = $region8
  $region5: #{encoder_forward.5} parent=0 // loop_body
    %s16 = ssub.s32 %s11, 1
    %s17 = ssub.s32 %s11, 2
    %s18 = sadd.s32 %s11, 1
    %s19 = ssub.s32 %s11, %s18
    %p20 = scmp.eq.s32.totalorder %s19, 0
    %s22 = sadd.s32 %s21, 1
    %s23 = scalar_select %p20, %s21, %s22
    %p26 = pneg %p20
    %p27 = scmp.eq.s32.totalorder %s11, 2
    %p28 = por %p26, %p27
    %p29 = scmp.ne.s32.totalorder %s21, %s24
    %p30 = scmp.eq.s32.totalorder %s11, 0
    %p31 = por %p29, %p30
    %p32 = scmp.ne.s32.totalorder %s21, %s24
    %p33 = scmp.eq.s32.totalorder %s16, 2
    %p34 = por %p32, %p33
    %p35 = scmp.ne.s32.totalorder %s24, %s25
    %p36 = scmp.eq.s32.totalorder %s16, 0
    %p37 = por %p35, %p36
    %p38 = scmp.ne.s32.totalorder %s24, %s25
    %p39 = scmp.eq.s32.totalorder %s17, 2
    %p40 = por %p38, %p39
    %p42 = scmp.ne.s32.totalorder %s25, %s41
    %p43 = scmp.eq.s32.totalorder %s17, 0
    %p44 = por %p42, %p43
    %s46 = sadd.s32 %s45, 1
    %p49 = scmp.eq.s32.totalorder %s11, 2
    %p50 = scmp.ne.s32.totalorder %s45, %s47
    %p51 = scmp.eq.s32.totalorder %s11, 0
    %p52 = por %p50, %p51
    %p53 = scmp.ne.s32.totalorder %s45, %s47
    %p54 = scmp.eq.s32.totalorder %s16, 2
    %p55 = por %p53, %p54
    %p56 = scmp.ne.s32.totalorder %s47, %s48
    %p57 = scmp.eq.s32.totalorder %s16, 0
    %p58 = por %p56, %p57
    %p59 = scmp.ne.s32.totalorder %s47, %s48
    %p60 = scmp.eq.s32.totalorder %s17, 2
    %p61 = por %p59, %p60
    %p63 = scmp.ne.s32.totalorder %s48, %s62
    %p64 = scmp.eq.s32.totalorder %s17, 0
    %p65 = por %p63, %p64
    %s66 = ssub.s32 %s11, %s18
    %p67 = scmp.eq.s32.totalorder %s66, 0
    %s69 = sadd.s32 %s68, 1
    %s70 = scalar_select %p67, %s68, %s69
    %p73 = pneg %p67
    %p74 = scmp.eq.s32.totalorder %s11, 2
    %p75 = por %p73, %p74
    %p76 = scmp.ne.s32.totalorder %s68, %s71
    %p77 = scmp.eq.s32.totalorder %s11, 0
    %p78 = por %p76, %p77
    %p79 = scmp.ne.s32.totalorder %s68, %s71
    %p80 = scmp.eq.s32.totalorder %s16, 2
    %p81 = por %p79, %p80
    %p82 = scmp.ne.s32.totalorder %s71, %s72
    %p83 = scmp.eq.s32.totalorder %s16, 0
    %p84 = por %p82, %p83
    %p85 = scmp.ne.s32.totalorder %s71, %s72
    %p86 = scmp.eq.s32.totalorder %s17, 2
    %p87 = por %p85, %p86
    %p89 = scmp.ne.s32.totalorder %s72, %s88
    %p90 = scmp.eq.s32.totalorder %s17, 0
    %p91 = por %p89, %p90
    %s93 = sadd.s32 %s92, 1
    %p96 = scmp.eq.s32.totalorder %s11, 2
    %p97 = scmp.ne.s32.totalorder %s92, %s94
    %p98 = scmp.eq.s32.totalorder %s11, 0
    %p99 = por %p97, %p98
    %p100 = scmp.ne.s32.totalorder %s92, %s94
    %p101 = scmp.eq.s32.totalorder %s16, 2
    %p102 = por %p100, %p101
    %p103 = scmp.ne.s32.totalorder %s94, %s95
    %p104 = scmp.eq.s32.totalorder %s16, 0
    %p105 = por %p103, %p104
    %p106 = scmp.ne.s32.totalorder %s94, %s95
    %p107 = scmp.eq.s32.totalorder %s17, 2
    %p108 = por %p106, %p107
    %p110 = scmp.ne.s32.totalorder %s95, %s109
    %p111 = scmp.eq.s32.totalorder %s17, 0
    %p112 = por %p110, %p111
    %s114 = sadd.s32 %s113, 1
    %p117 = scmp.eq.s32.totalorder %s11, 2
    %p118 = scmp.ne.s32.totalorder %s113, %s115
    %p119 = scmp.eq.s32.totalorder %s11, 0
    %p120 = por %p118, %p119
    %p121 = scmp.ne.s32.totalorder %s113, %s115
    %p122 = scmp.eq.s32.totalorder %s16, 2
    %p123 = por %p121, %p122
    %p124 = scmp.ne.s32.totalorder %s115, %s116
    %p125 = scmp.eq.s32.totalorder %s16, 0
    %p126 = por %p124, %p125
    %p127 = scmp.ne.s32.totalorder %s115, %s116
    %p128 = scmp.eq.s32.totalorder %s17, 2
    %p129 = por %p127, %p128
    %p131 = scmp.ne.s32.totalorder %s116, %s130
    %p132 = scmp.eq.s32.totalorder %s17, 0
    %p133 = por %p131, %p132
    %p134 = scmp.le.s32.totalorder 1, %s11
    %p135 = scmp.lt.s32.totalorder %s11, 4
    %p136 = pnand %p134, %p135
    %p137 = pneg %p136
    // Predicated region
    $region9: #{encoder_forward.5} parent=5 // pred_check
      _
    $region10: #{encoder_forward.5} parent=5 // pred_check_branch
      %139 = sbr.rel (%p136) target = $region12
    $region11: #{encoder_forward.5} parent=5 // pred_region
      %s140 = ssub.s32 %s11, 1
      // Predicated region
      $region13: #{encoder_forward.5} parent=11 // pred_check
        %p141 = pneg %p58
      $region14: #{encoder_forward.5} parent=11 // pred_check_branch
        %143 = sbr.rel (%p141) target = $region16
      $region15: #{encoder_forward.5} parent=11 // pred_region
        _
      $region16: #{encoder_forward.5} parent=11 // pred_fallthru
        _
    $region12: #{encoder_forward.5} parent=5 // pred_fallthru
      _
    %p144 = scmp.lt.s32.totalorder %s11, 3
    // Predicated region
    $region17: #{encoder_forward.5} parent=5 // pred_check
      %p145 = pneg %p144
    $region18: #{encoder_forward.5} parent=5 // pred_check_branch
      %147 = sbr.rel (%p145) target = $region20
    $region19: #{encoder_forward.5} parent=5 // pred_region
      // Predicated region
      $region21: #{encoder_forward.5} parent=19 // pred_check
        %p148 = pneg %p31
      $region22: #{encoder_forward.5} parent=19 // pred_check_branch
        %150 = sbr.rel (%p148) target = $region24
      $region23: #{encoder_forward.5} parent=19 // pred_region
        %s151 = smul.u32 4, %s11
        %p152 = scmp.lt.s32.totalorder %s151, 11
        %s153 = scalar_select %p152, %s151, 11
        %s154 = smul.addr %s153, 4
        %s155 = smul.addr %s154, 8
        %s156 = scalar_lea.vmem %s0, %s155
        %s157 = smul.u32 4, %s11
      $region24: #{encoder_forward.5} parent=19 // pred_fallthru
        _
    $region20: #{encoder_forward.5} parent=5 // pred_fallthru
      _
    %p158 = scmp.le.s32.totalorder 1, %s11
    %p159 = scmp.lt.s32.totalorder %s11, 4
    %p160 = pnand %p158, %p159
    %p161 = pneg %p160
    // Predicated region
    $region25: #{encoder_forward.5} parent=5 // pred_check
      _
    $region26: #{encoder_forward.5} parent=5 // pred_check_branch
      %163 = sbr.rel (%p160) target = $region28
    $region27: #{encoder_forward.5} parent=5 // pred_region
      %s164 = ssub.s32 %s11, 1
      %s165 = smul.u32 4, %s16
      %p166 = scmp.lt.s32.totalorder %s165, 11
      %s167 = scalar_select %p166, %s165, 11
      %s168 = smul.addr %s167, 4
      %s169 = smul.addr %s168, 8
      %s170 = scalar_lea.vmem %s0, %s169
      %p171 = pneg %p37
      %p172 = pneg %p34
      %p173 = pneg %p58
      %p174 = pneg %p55
      %p175 = pneg %p84
      %p176 = pneg %p81
      %s177 = smul.u32 4, %s16
      %p178 = scmp.lt.s32.totalorder %s177, 11
      %s179 = scalar_select %p178, %s177, 11
      %s180 = smul.addr %s179, 8
      %s181 = scalar_lea.vmem %s2, %s180
      %p182 = pneg %p105
      %p183 = pneg %p102
      %p184 = pneg %p126
      %p185 = pneg %p123
      %s186 = smul.u32 4, %s16
      %p187 = scmp.lt.s32.totalorder %s186, 11
      %s188 = scalar_select %p187, %s186, 11
      %s189 = smul.addr %s188, 4
      %s190 = smul.addr %s189, 8
      %s191 = scalar_lea.vmem %s0, %s190
      %s192 = smul.u32 4, %s16
      %s193 = smul.u32 4, %s16
      %p194 = scmp.lt.s32.totalorder %s193, 11
      %s195 = scalar_select %p194, %s193, 11
      %s196 = smul.addr %s195, 8
      %s197 = scalar_lea.vmem %s2, %s196
      %s198 = smul.u32 4, %s16
      %p200 = scmp.eq.s32.totalorder %s16, 0
      // Predicated region
      $region29: #{encoder_forward.5} parent=27 // pred_check
        %p201 = pneg %p200
      $region30: #{encoder_forward.5} parent=27 // pred_check_branch
        %203 = sbr.rel (%p201) target = $region32
      $region31: #{encoder_forward.5} parent=27 // pred_region
        %204 = vst [vmem:[#allocation2] sm:$0xff] 0.0
        %205 = vst [vmem:[#allocation3] sm:$0xff] 0.0
      $region32: #{encoder_forward.5} parent=27 // pred_fallthru
        _
      %v206 = vld [vmem:[%s1] sm:$0xff]
      %v207 = vld [vmem:[%s1 + $0x8] sm:$0xff]
      %v208 = vld [vmem:[%s1 + $0x10] sm:$0xff]
      %v209 = vld [vmem:[%s1 + $0x18] sm:$0xff]
      %v210 = vld [vmem:[%s1 + $0x20] sm:$0xff]
      %v211 = vld [vmem:[%s1 + $0x28] sm:$0xff]
      %v212 = vld [vmem:[%s1 + $0x30] sm:$0xff]
      %v213 = vld [vmem:[%s1 + $0x38] sm:$0xff]
      %v214 = vld [vmem:[%s1 + $0x40] sm:$0xff]
      %v215 = vld [vmem:[%s1 + $0x48] sm:$0xff]
      %v216 = vld [vmem:[%s1 + $0x50] sm:$0xff]
      %v217 = vld [vmem:[%s1 + $0x58] sm:$0xff]
      %v218 = vld [vmem:[%s1 + $0x60] sm:$0xff]
      %v219 = vld [vmem:[%s1 + $0x68] sm:$0xff]
      %v220 = vld [vmem:[%s1 + $0x70] sm:$0xff]
      %v221 = vld [vmem:[%s1 + $0x78] sm:$0xff]
      %v222 = vld [vmem:[%s1 + $0x80] sm:$0xff]
      %v223 = vld [vmem:[%s1 + $0x88] sm:$0xff]
      %v224 = vld [vmem:[%s1 + $0x90] sm:$0xff]
      %v225 = vld [vmem:[%s1 + $0x98] sm:$0xff]
      %v226 = vld [vmem:[%s1 + $0xa0] sm:$0xff]
      %v227 = vld [vmem:[%s1 + $0xa8] sm:$0xff]
      %v228 = vld [vmem:[%s1 + $0xb0] sm:$0xff]
      %v229 = vld [vmem:[%s1 + $0xb8] sm:$0xff]
      %v230 = vld [vmem:[%s1 + $0xc0] sm:$0xff]
      %v231 = vld [vmem:[%s1 + $0xc8] sm:$0xff]
      %v232 = vld [vmem:[%s1 + $0xd0] sm:$0xff]
      %v233 = vld [vmem:[%s1 + $0xd8] sm:$0xff]
      %v234 = vld [vmem:[%s1 + $0xe0] sm:$0xff]
      %v235 = vld [vmem:[%s1 + $0xe8] sm:$0xff]
      %v236 = vld [vmem:[%s1 + $0xf0] sm:$0xff]
      %v237 = vld [vmem:[%s1 + $0xf8] sm:$0xff]
      %v238 = vld [vmem:[#allocation2] sm:$0xff]
      %v239 = vld [vmem:[#allocation3] sm:$0xff]
      %v240 = vpack.c.bf16 %v238, %v238
      %v241 = vld [vmem:[%s191] sm:$0xff]
      %v242 = vld [vmem:[%s191 + $0x8] sm:$0xff]
      %v243 = vld [vmem:[%s191 + $0x10] sm:$0xff]
      %v244 = vld [vmem:[%s191 + $0x18] sm:$0xff]
      %v277 = vunpack.c.l.b16 %v206
      %v278 = vunpack.c.h.b16 %v206
      %v279 = vunpack.c.l.b16 %v207
      %v280 = vunpack.c.h.b16 %v207
      %v281 = vunpack.c.l.b16 %v208
      %v282 = vunpack.c.h.b16 %v208
      %v283 = vunpack.c.l.b16 %v209
      %v284 = vunpack.c.h.b16 %v209
      %v285 = vunpack.c.l.b16 %v210
      %v286 = vunpack.c.h.b16 %v210
      %v287 = vunpack.c.l.b16 %v211
      %v288 = vunpack.c.h.b16 %v211
      %v289 = vunpack.c.l.b16 %v212
      %v290 = vunpack.c.h.b16 %v212
      %v291 = vunpack.c.l.b16 %v213
      %v292 = vunpack.c.h.b16 %v213
      %v293 = vunpack.c.l.b16 %v214
      %v294 = vunpack.c.h.b16 %v214
      %v295 = vunpack.c.l.b16 %v215
      %v296 = vunpack.c.h.b16 %v215
      %v297 = vunpack.c.l.b16 %v216
      %v298 = vunpack.c.h.b16 %v216
      %v299 = vunpack.c.l.b16 %v217
      %v300 = vunpack.c.h.b16 %v217
      %v301 = vunpack.c.l.b16 %v218
      %v302 = vunpack.c.h.b16 %v218
      %v303 = vunpack.c.l.b16 %v219
      %v304 = vunpack.c.h.b16 %v219
      %v305 = vunpack.c.l.b16 %v220
      %v306 = vunpack.c.h.b16 %v220
      %v307 = vunpack.c.l.b16 %v221
      %v308 = vunpack.c.h.b16 %v221
      %v309 = vunpack.c.l.b16 %v222
      %v310 = vunpack.c.h.b16 %v222
      %v311 = vunpack.c.l.b16 %v223
      %v312 = vunpack.c.h.b16 %v223
      %v313 = vunpack.c.l.b16 %v224
      %v314 = vunpack.c.h.b16 %v224
      %v315 = vunpack.c.l.b16 %v225
      %v316 = vunpack.c.h.b16 %v225
      %v317 = vunpack.c.l.b16 %v226
      %v318 = vunpack.c.h.b16 %v226
      %v319 = vunpack.c.l.b16 %v227
      %v320 = vunpack.c.h.b16 %v227
      %v321 = vunpack.c.l.b16 %v228
      %v322 = vunpack.c.h.b16 %v228
      %v323 = vunpack.c.l.b16 %v229
      %v324 = vunpack.c.h.b16 %v229
      %v325 = vunpack.c.l.b16 %v230
      %v326 = vunpack.c.h.b16 %v230
      %v327 = vunpack.c.l.b16 %v231
      %v328 = vunpack.c.h.b16 %v231
      %v329 = vunpack.c.l.b16 %v232
      %v330 = vunpack.c.h.b16 %v232
      %v331 = vunpack.c.l.b16 %v233
      %v332 = vunpack.c.h.b16 %v233
      %v333 = vunpack.c.l.b16 %v234
      %v334 = vunpack.c.h.b16 %v234
      %v335 = vunpack.c.l.b16 %v235
      %v336 = vunpack.c.h.b16 %v235
      %v337 = vunpack.c.l.b16 %v236
      %v338 = vunpack.c.h.b16 %v236
      %v339 = vunpack.c.l.b16 %v237
      %v340 = vunpack.c.h.b16 %v237
      %v341 = vpack.c.b16 %v281, %v277
      %v342 = vpack.c.b16 %v282, %v278
      %v343 = vpack.c.b16 %v283, %v279
      %v344 = vpack.c.b16 %v284, %v280
      %v345 = vpack.c.b16 %v289, %v285
      %v346 = vpack.c.b16 %v290, %v286
      %v347 = vpack.c.b16 %v291, %v287
      %v348 = vpack.c.b16 %v292, %v288
      %v349 = vpack.c.b16 %v297, %v293
      %v350 = vpack.c.b16 %v298, %v294
      %v351 = vpack.c.b16 %v299, %v295
      %v352 = vpack.c.b16 %v300, %v296
      %v353 = vpack.c.b16 %v305, %v301
      %v354 = vpack.c.b16 %v306, %v302
      %v355 = vpack.c.b16 %v307, %v303
      %v356 = vpack.c.b16 %v308, %v304
      %v357 = vpack.c.b16 %v313, %v309
      %v358 = vpack.c.b16 %v314, %v310
      %v359 = vpack.c.b16 %v315, %v311
      %v360 = vpack.c.b16 %v316, %v312
      %v361 = vpack.c.b16 %v321, %v317
      %v362 = vpack.c.b16 %v322, %v318
      %v363 = vpack.c.b16 %v323, %v319
      %v364 = vpack.c.b16 %v324, %v320
      %v365 = vpack.c.b16 %v329, %v325
      %v366 = vpack.c.b16 %v330, %v326
      %v367 = vpack.c.b16 %v331, %v327
      %v368 = vpack.c.b16 %v332, %v328
      %v369 = vpack.c.b16 %v337, %v333
      %v370 = vpack.c.b16 %v338, %v334
      %v371 = vpack.c.b16 %v339, %v335
      %v372 = vpack.c.b16 %v340, %v336
      %405 = vmatprep.subr.bf16.mxu0 %v342
      %406 = vmatpush1.bf16.msra.mxu0 %v341
      %407 = vmatprep.subr.bf16.mxu0 %v346
      %408 = vmatpush1.bf16.msra.mxu0 %v345
      %409 = vmatprep.subr.bf16.mxu0 %v350
      %410 = vmatpush1.bf16.msra.mxu0 %v349
      %411 = vmatprep.subr.bf16.mxu0 %v354
      %412 = vmatpush1.bf16.msra.mxu0 %v353
      %413 = vmatprep.subr.bf16.mxu0 %v358
      %414 = vmatpush1.bf16.msra.mxu0 %v357
      %415 = vmatprep.subr.bf16.mxu0 %v362
      %416 = vmatpush1.bf16.msra.mxu0 %v361
      %417 = vmatprep.subr.bf16.mxu0 %v366
      %418 = vmatpush1.bf16.msra.mxu0 %v365
      %419 = vmatprep.subr.bf16.mxu0 %v370
      %420 = vmatpush1.bf16.msra.mxu0 %v369
      %421 = vmatprep.subr.bf16.mxu0 0
      %422 = vmatpush1.bf16.msra.mxu0 0
      %423 = vmatprep.subr.bf16.mxu0 0
      %424 = vmatpush1.bf16.msra.mxu0 0
      %425 = vmatprep.subr.bf16.mxu0 0
      %426 = vmatpush1.bf16.msra.mxu0 0
      %427 = vmatprep.subr.bf16.mxu0 0
      %428 = vmatpush1.bf16.msra.mxu0 0
      %429 = vmatprep.subr.bf16.mxu0 0
      %430 = vmatpush1.bf16.msra.mxu0 0
      %431 = vmatprep.subr.bf16.mxu0 0
      %432 = vmatpush1.bf16.msra.mxu0 0
      %433 = vmatprep.subr.bf16.mxu0 0
      %434 = vmatpush1.bf16.msra.mxu0 0
      %435 = vmatprep.subr.bf16.mxu0 0
      %436 = vmatpush1.bf16.msra.mxu0 0
      %437 = vmatprep.mubr.bf16.mxu0 0
      %438 = vmatmul.mubr.bf16.gmra.mrb[0].mxu0 %v240
      %v439 = vpop.f32.mrb[0].mxu0
      %v440 = vadd.f32 %v241, %v439
      %v441 = vpop.f32.mrb[0].mxu0
      %v442 = vadd.f32 %v242, %v441
      %v443 = vpop.f32.mrb[0].mxu0
      %v444 = vpop.f32.mrb[0].mxu0
      %445 = vdwg.mxu0
      %446 = vmatprep.subr.bf16.mxu0 %v344
      %447 = vmatpush1.bf16.msra.mxu0 %v343
      %448 = vmatprep.subr.bf16.mxu0 %v348
      %449 = vmatpush1.bf16.msra.mxu0 %v347
      %450 = vmatprep.subr.bf16.mxu0 %v352
      %451 = vmatpush1.bf16.msra.mxu0 %v351
      %452 = vmatprep.subr.bf16.mxu0 %v356
      %453 = vmatpush1.bf16.msra.mxu0 %v355
      %454 = vmatprep.subr.bf16.mxu0 %v360
      %455 = vmatpush1.bf16.msra.mxu0 %v359
      %456 = vmatprep.subr.bf16.mxu0 %v364
      %457 = vmatpush1.bf16.msra.mxu0 %v363
      %458 = vmatprep.subr.bf16.mxu0 %v368
      %459 = vmatpush1.bf16.msra.mxu0 %v367
      %460 = vmatprep.subr.bf16.mxu0 %v372
      %461 = vmatpush1.bf16.msra.mxu0 %v371
      %462 = vmatprep.subr.bf16.mxu0 0
      %463 = vmatpush1.bf16.msra.mxu0 0
      %464 = vmatprep.subr.bf16.mxu0 0
      %465 = vmatpush1.bf16.msra.mxu0 0
      %466 = vmatprep.subr.bf16.mxu0 0
      %467 = vmatpush1.bf16.msra.mxu0 0
      %468 = vmatprep.subr.bf16.mxu0 0
      %469 = vmatpush1.bf16.msra.mxu0 0
      %470 = vmatprep.subr.bf16.mxu0 0
      %471 = vmatpush1.bf16.msra.mxu0 0
      %472 = vmatprep.subr.bf16.mxu0 0
      %473 = vmatpush1.bf16.msra.mxu0 0
      %474 = vmatprep.subr.bf16.mxu0 0
      %475 = vmatpush1.bf16.msra.mxu0 0
      %476 = vmatprep.subr.bf16.mxu0 0
      %477 = vmatpush1.bf16.msra.mxu0 0
      %478 = vmatprep.mubr.bf16.mxu0 0
      %479 = vmatmul.mubr.bf16.gmra.mrb[0].mxu0 %v240
      %v480 = vpop.f32.mrb[0].mxu0
      %v481 = vadd.f32 %v243, %v480
      %v482 = vpop.f32.mrb[0].mxu0
      %v483 = vadd.f32 %v244, %v482
      %v484 = vpop.f32.mrb[0].mxu0
      %v485 = vpop.f32.mrb[0].mxu0
      %486 = vdwg.mxu0
      %v487 = vxor.u32 %v440, 2147483648
      %v488 = vmul.f32 %v487, 1.442695
      %v489 = vpow.pop %v488
      %v490 = vadd.f32 %v489, 1.0
      %v491 = vrcp.pop %v490
      %v492 = vmul.f32 1.0, %v491
      %v493 = vxor.u32 %v442, 2147483648
      %v494 = vmul.f32 %v493, 1.442695
      %v495 = vpow.pop %v494
      %v496 = vadd.f32 %v495, 1.0
      %v497 = vrcp.pop %v496
      %v498 = vmul.f32 1.0, %v497
      %v499 = vtanh.pop %v481
      %v500 = vxor.u32 %v483, 2147483648
      %v501 = vmul.f32 %v500, 1.442695
      %v502 = vpow.pop %v501
      %v503 = vadd.f32 %v502, 1.0
      %v504 = vrcp.pop %v503
      %v505 = vmul.f32 1.0, %v504
      %v506 = vmul.f32 %v498, %v239
      %v507 = vmul.f32 %v492, %v499
      %v508 = vadd.f32 %v506, %v507
      %v509 = vtanh.pop %v508
      %v510 = vmul.f32 %v505, %v509
      %s511 = smul.u32 %s16, 4
      %p512 = scmp.lt.s32.totalorder %s511, 10
      %s513 = scalar_select %p512, 1, 0
      %v514 = vstv %s513
      %vm515 = vcmp.eq.s32.totalorder %v514, 1
      %v516 = vsel %vm515, %v510, %v238
      %v517 = vsel %vm515, %v508, %v239
      %518 = vst [vmem:[%s197] sm:$0xff] %v516
      %v519 = vpack.c.bf16 %v516, %v516
      %s520 = scalar_lea.vmem %s191, 32
      %v521 = vld [vmem:[%s520] sm:$0xff]
      %v522 = vld [vmem:[%s520 + $0x8] sm:$0xff]
      %v523 = vld [vmem:[%s520 + $0x10] sm:$0xff]
      %v524 = vld [vmem:[%s520 + $0x18] sm:$0xff]
      %525 = vmatprep.subr.bf16.mxu0 %v342
      %526 = vmatpush1.bf16.msra.mxu0 %v341
      %527 = vmatprep.subr.bf16.mxu0 %v346
      %528 = vmatpush1.bf16.msra.mxu0 %v345
      %529 = vmatprep.subr.bf16.mxu0 %v350
      %530 = vmatpush1.bf16.msra.mxu0 %v349
      %531 = vmatprep.subr.bf16.mxu0 %v354
      %532 = vmatpush1.bf16.msra.mxu0 %v353
      %533 = vmatprep.subr.bf16.mxu0 %v358
      %534 = vmatpush1.bf16.msra.mxu0 %v357
      %535 = vmatprep.subr.bf16.mxu0 %v362
      %536 = vmatpush1.bf16.msra.mxu0 %v361
      %537 = vmatprep.subr.bf16.mxu0 %v366
      %538 = vmatpush1.bf16.msra.mxu0 %v365
      %539 = vmatprep.subr.bf16.mxu0 %v370
      %540 = vmatpush1.bf16.msra.mxu0 %v369
      %541 = vmatprep.subr.bf16.mxu0 0
      %542 = vmatpush1.bf16.msra.mxu0 0
      %543 = vmatprep.subr.bf16.mxu0 0
      %544 = vmatpush1.bf16.msra.mxu0 0
      %545 = vmatprep.subr.bf16.mxu0 0
      %546 = vmatpush1.bf16.msra.mxu0 0
      %547 = vmatprep.subr.bf16.mxu0 0
      %548 = vmatpush1.bf16.msra.mxu0 0
      %549 = vmatprep.subr.bf16.mxu0 0
      %550 = vmatpush1.bf16.msra.mxu0 0
      %551 = vmatprep.subr.bf16.mxu0 0
      %552 = vmatpush1.bf16.msra.mxu0 0
      %553 = vmatprep.subr.bf16.mxu0 0
      %554 = vmatpush1.bf16.msra.mxu0 0
      %555 = vmatprep.subr.bf16.mxu0 0
      %556 = vmatpush1.bf16.msra.mxu0 0
      %557 = vmatprep.mubr.bf16.mxu0 0
      %558 = vmatmul.mubr.bf16.gmra.mrb[0].mxu0 %v519
      %v559 = vpop.f32.mrb[0].mxu0
      %v560 = vadd.f32 %v521, %v559
      %v561 = vpop.f32.mrb[0].mxu0
      %v562 = vadd.f32 %v522, %v561
      %v563 = vpop.f32.mrb[0].mxu0
      %v564 = vpop.f32.mrb[0].mxu0
      %565 = vdwg.mxu0
      %566 = vmatprep.subr.bf16.mxu0 %v344
      %567 = vmatpush1.bf16.msra.mxu0 %v343
      %568 = vmatprep.subr.bf16.mxu0 %v348
      %569 = vmatpush1.bf16.msra.mxu0 %v347
      %570 = vmatprep.subr.bf16.mxu0 %v352
      %571 = vmatpush1.bf16.msra.mxu0 %v351
      %572 = vmatprep.subr.bf16.mxu0 %v356
      %573 = vmatpush1.bf16.msra.mxu0 %v355
      %574 = vmatprep.subr.bf16.mxu0 %v360
      %575 = vmatpush1.bf16.msra.mxu0 %v359
      %576 = vmatprep.subr.bf16.mxu0 %v364
      %577 = vmatpush1.bf16.msra.mxu0 %v363
      %578 = vmatprep.subr.bf16.mxu0 %v368
      %579 = vmatpush1.bf16.msra.mxu0 %v367
      %580 = vmatprep.subr.bf16.mxu0 %v372
      %581 = vmatpush1.bf16.msra.mxu0 %v371
      %582 = vmatprep.subr.bf16.mxu0 0
      %583 = vmatpush1.bf16.msra.mxu0 0
      %584 = vmatprep.subr.bf16.mxu0 0
      %585 = vmatpush1.bf16.msra.mxu0 0
      %586 = vmatprep.subr.bf16.mxu0 0
      %587 = vmatpush1.bf16.msra.mxu0 0
      %588 = vmatprep.subr.bf16.mxu0 0
      %589 = vmatpush1.bf16.msra.mxu0 0
      %590 = vmatprep.subr.bf16.mxu0 0
      %591 = vmatpush1.bf16.msra.mxu0 0
      %592 = vmatprep.subr.bf16.mxu0 0
      %593 = vmatpush1.bf16.msra.mxu0 0
      %594 = vmatprep.subr.bf16.mxu0 0
      %595 = vmatpush1.bf16.msra.mxu0 0
      %596 = vmatprep.subr.bf16.mxu0 0
      %597 = vmatpush1.bf16.msra.mxu0 0
      %598 = vmatprep.mubr.bf16.mxu0 0
      %599 = vmatmul.mubr.bf16.gmra.mrb[0].mxu0 %v519
      %v600 = vpop.f32.mrb[0].mxu0
      %v601 = vadd.f32 %v523, %v600
      %v602 = vpop.f32.mrb[0].mxu0
      %v603 = vadd.f32 %v524, %v602
      %v604 = vpop.f32.mrb[0].mxu0
      %v605 = vpop.f32.mrb[0].mxu0
      %606 = vdwg.mxu0
      %v607 = vxor.u32 %v560, 2147483648
      %v608 = vmul.f32 %v607, 1.442695
      %v609 = vpow.pop %v608
      %v610 = vadd.f32 %v609, 1.0
      %v611 = vrcp.pop %v610
      %v612 = vmul.f32 1.0, %v611
      %v613 = vxor.u32 %v562, 2147483648
      %v614 = vmul.f32 %v613, 1.442695
      %v615 = vpow.pop %v614
      %v616 = vadd.f32 %v615, 1.0
      %v617 = vrcp.pop %v616
      %v618 = vmul.f32 1.0, %v617
      %v619 = vtanh.pop %v601
      %v620 = vxor.u32 %v603, 2147483648
      %v621 = vmul.f32 %v620, 1.442695
      %v622 = vpow.pop %v621
      %v623 = vadd.f32 %v622, 1.0
      %v624 = vrcp.pop %v623
      %v625 = vmul.f32 1.0, %v624
      %v626 = vmul.f32 %v618, %v517
      %v627 = vmul.f32 %v612, %v619
      %v628 = vadd.f32 %v626, %v627
      %v629 = vtanh.pop %v628
      %v630 = vmul.f32 %v625, %v629
      %s631 = sadd.s32 %s511, 1
      %p632 = scmp.lt.s32.totalorder %s631, 10
      %s633 = scalar_select %p632, 1, 0
      %v634 = vstv %s633
      %vm635 = vcmp.eq.s32.totalorder %v634, 1
      %v636 = vsel %vm635, %v630, %v516
      %v637 = vsel %vm635, %v628, %v517
      %s638 = scalar_lea.vmem %s197, 8
      %639 = vst [vmem:[%s638] sm:$0xff] %v636
      %v640 = vpack.c.bf16 %v636, %v636
      %s641 = scalar_lea.vmem %s191, 64
      %v642 = vld [vmem:[%s641] sm:$0xff]
      %v643 = vld [vmem:[%s641 + $0x8] sm:$0xff]
      %v644 = vld [vmem:[%s641 + $0x10] sm:$0xff]
      %v645 = vld [vmem:[%s641 + $0x18] sm:$0xff]
      %646 = vmatprep.subr.bf16.mxu0 %v342
      %647 = vmatpush1.bf16.msra.mxu0 %v341
      %648 = vmatprep.subr.bf16.mxu0 %v346
      %649 = vmatpush1.bf16.msra.mxu0 %v345
      %650 = vmatprep.subr.bf16.mxu0 %v350
      %651 = vmatpush1.bf16.msra.mxu0 %v349
      %652 = vmatprep.subr.bf16.mxu0 %v354
      %653 = vmatpush1.bf16.msra.mxu0 %v353
      %654 = vmatprep.subr.bf16.mxu0 %v358
      %655 = vmatpush1.bf16.msra.mxu0 %v357
      %656 = vmatprep.subr.bf16.mxu0 %v362
      %657 = vmatpush1.bf16.msra.mxu0 %v361
      %658 = vmatprep.subr.bf16.mxu0 %v366
      %659 = vmatpush1.bf16.msra.mxu0 %v365
      %660 = vmatprep.subr.bf16.mxu0 %v370
      %661 = vmatpush1.bf16.msra.mxu0 %v369
      %662 = vmatprep.subr.bf16.mxu0 0
      %663 = vmatpush1.bf16.msra.mxu0 0
      %664 = vmatprep.subr.bf16.mxu0 0
      %665 = vmatpush1.bf16.msra.mxu0 0
      %666 = vmatprep.subr.bf16.mxu0 0
      %667 = vmatpush1.bf16.msra.mxu0 0
      %668 = vmatprep.subr.bf16.mxu0 0
      %669 = vmatpush1.bf16.msra.mxu0 0
      %670 = vmatprep.subr.bf16.mxu0 0
      %671 = vmatpush1.bf16.msra.mxu0 0
      %672 = vmatprep.subr.bf16.mxu0 0
      %673 = vmatpush1.bf16.msra.mxu0 0
      %674 = vmatprep.subr.bf16.mxu0 0
      %675 = vmatpush1.bf16.msra.mxu0 0
      %676 = vmatprep.subr.bf16.mxu0 0
      %677 = vmatpush1.bf16.msra.mxu0 0
      %678 = vmatprep.mubr.bf16.mxu0 0
      %679 = vmatmul.mubr.bf16.gmra.mrb[0].mxu0 %v640
      %v680 = vpop.f32.mrb[0].mxu0
      %v681 = vadd.f32 %v642, %v680
      %v682 = vpop.f32.mrb[0].mxu0
      %v683 = vadd.f32 %v643, %v682
      %v684 = vpop.f32.mrb[0].mxu0
      %v685 = vpop.f32.mrb[0].mxu0
      %686 = vdwg.mxu0
      %687 = vmatprep.subr.bf16.mxu0 %v344
      %688 = vmatpush1.bf16.msra.mxu0 %v343
      %689 = vmatprep.subr.bf16.mxu0 %v348
      %690 = vmatpush1.bf16.msra.mxu0 %v347
      %691 = vmatprep.subr.bf16.mxu0 %v352
      %692 = vmatpush1.bf16.msra.mxu0 %v351
      %693 = vmatprep.subr.bf16.mxu0 %v356
      %694 = vmatpush1.bf16.msra.mxu0 %v355
      %695 = vmatprep.subr.bf16.mxu0 %v360
      %696 = vmatpush1.bf16.msra.mxu0 %v359
      %697 = vmatprep.subr.bf16.mxu0 %v364
      %698 = vmatpush1.bf16.msra.mxu0 %v363
      %699 = vmatprep.subr.bf16.mxu0 %v368
      %700 = vmatpush1.bf16.msra.mxu0 %v367
      %701 = vmatprep.subr.bf16.mxu0 %v372
      %702 = vmatpush1.bf16.msra.mxu0 %v371
      %703 = vmatprep.subr.bf16.mxu0 0
      %704 = vmatpush1.bf16.msra.mxu0 0
      %705 = vmatprep.subr.bf16.mxu0 0
      %706 = vmatpush1.bf16.msra.mxu0 0
      %707 = vmatprep.subr.bf16.mxu0 0
      %708 = vmatpush1.bf16.msra.mxu0 0
      %709 = vmatprep.subr.bf16.mxu0 0
      %710 = vmatpush1.bf16.msra.mxu0 0
      %711 = vmatprep.subr.bf16.mxu0 0
      %712 = vmatpush1.bf16.msra.mxu0 0
      %713 = vmatprep.subr.bf16.mxu0 0
      %714 = vmatpush1.bf16.msra.mxu0 0
      %715 = vmatprep.subr.bf16.mxu0 0
      %716 = vmatpush1.bf16.msra.mxu0 0
      %717 = vmatprep.subr.bf16.mxu0 0
      %718 = vmatpush1.bf16.msra.mxu0 0
      %719 = vmatprep.mubr.bf16.mxu0 0
      %720 = vmatmul.mubr.bf16.gmra.mrb[0].mxu0 %v640
      %v721 = vpop.f32.mrb[0].mxu0
      %v722 = vadd.f32 %v644, %v721
      %v723 = vpop.f32.mrb[0].mxu0
      %v724 = vadd.f32 %v645, %v723
      %v725 = vpop.f32.mrb[0].mxu0
      %v726 = vpop.f32.mrb[0].mxu0
      %727 = vdwg.mxu0
      %v728 = vxor.u32 %v681, 2147483648
      %v729 = vmul.f32 %v728, 1.442695
      %v730 = vpow.pop %v729
      %v731 = vadd.f32 %v730, 1.0
      %v732 = vrcp.pop %v731
      %v733 = vmul.f32 1.0, %v732
      %v734 = vxor.u32 %v683, 2147483648
      %v735 = vmul.f32 %v734, 1.442695
      %v736 = vpow.pop %v735
      %v737 = vadd.f32 %v736, 1.0
      %v738 = vrcp.pop %v737
      %v739 = vmul.f32 1.0, %v738
      %v740 = vtanh.pop %v722
      %v741 = vxor.u32 %v724, 2147483648
      %v742 = vmul.f32 %v741, 1.442695
      %v743 = vpow.pop %v742
      %v744 = vadd.f32 %v743, 1.0
      %v745 = vrcp.pop %v744
      %v746 = vmul.f32 1.0, %v745
      %v747 = vmul.f32 %v739, %v637
      %v748 = vmul.f32 %v733, %v740
      %v749 = vadd.f32 %v747, %v748
      %v750 = vtanh.pop %v749
      %v751 = vmul.f32 %v746, %v750
      %s752 = sadd.s32 %s511, 2
      %p753 = scmp.lt.s32.totalorder %s752, 10
      %s754 = scalar_select %p753, 1, 0
      %v755 = vstv %s754
      %vm756 = vcmp.eq.s32.totalorder %v755, 1
      %v757 = vsel %vm756, %v751, %v636
      %v758 = vsel %vm756, %v749, %v637
      %s759 = scalar_lea.vmem %s197, 16
      %760 = vst [vmem:[%s759] sm:$0xff] %v757
      %v761 = vpack.c.bf16 %v757, %v757
      %s762 = scalar_lea.vmem %s191, 96
      %v763 = vld [vmem:[%s762] sm:$0xff]
      %v764 = vld [vmem:[%s762 + $0x8] sm:$0xff]
      %v765 = vld [vmem:[%s762 + $0x10] sm:$0xff]
      %v766 = vld [vmem:[%s762 + $0x18] sm:$0xff]
      %767 = vmatprep.subr.bf16.mxu0 %v342
      %768 = vmatpush1.bf16.msra.mxu0 %v341
      %769 = vmatprep.subr.bf16.mxu0 %v346
      %770 = vmatpush1.bf16.msra.mxu0 %v345
      %771 = vmatprep.subr.bf16.mxu0 %v350
      %772 = vmatpush1.bf16.msra.mxu0 %v349
      %773 = vmatprep.subr.bf16.mxu0 %v354
      %774 = vmatpush1.bf16.msra.mxu0 %v353
      %775 = vmatprep.subr.bf16.mxu0 %v358
      %776 = vmatpush1.bf16.msra.mxu0 %v357
      %777 = vmatprep.subr.bf16.mxu0 %v362
      %778 = vmatpush1.bf16.msra.mxu0 %v361
      %779 = vmatprep.subr.bf16.mxu0 %v366
      %780 = vmatpush1.bf16.msra.mxu0 %v365
      %781 = vmatprep.subr.bf16.mxu0 %v370
      %782 = vmatpush1.bf16.msra.mxu0 %v369
      %783 = vmatprep.subr.bf16.mxu0 0
      %784 = vmatpush1.bf16.msra.mxu0 0
      %785 = vmatprep.subr.bf16.mxu0 0
      %786 = vmatpush1.bf16.msra.mxu0 0
      %787 = vmatprep.subr.bf16.mxu0 0
      %788 = vmatpush1.bf16.msra.mxu0 0
      %789 = vmatprep.subr.bf16.mxu0 0
      %790 = vmatpush1.bf16.msra.mxu0 0
      %791 = vmatprep.subr.bf16.mxu0 0
      %792 = vmatpush1.bf16.msra.mxu0 0
      %793 = vmatprep.subr.bf16.mxu0 0
      %794 = vmatpush1.bf16.msra.mxu0 0
      %795 = vmatprep.subr.bf16.mxu0 0
      %796 = vmatpush1.bf16.msra.mxu0 0
      %797 = vmatprep.subr.bf16.mxu0 0
      %798 = vmatpush1.bf16.msra.mxu0 0
      %799 = vmatprep.mubr.bf16.mxu0 0
      %800 = vmatmul.mubr.bf16.gmra.mrb[0].mxu0 %v761
      %v801 = vpop.f32.mrb[0].mxu0
      %v802 = vadd.f32 %v763, %v801
      %v803 = vpop.f32.mrb[0].mxu0
      %v804 = vadd.f32 %v764, %v803
      %v805 = vpop.f32.mrb[0].mxu0
      %v806 = vpop.f32.mrb[0].mxu0
      %807 = vdwg.mxu0
      %808 = vmatprep.subr.bf16.mxu0 %v344
      %809 = vmatpush1.bf16.msra.mxu0 %v343
      %810 = vmatprep.subr.bf16.mxu0 %v348
      %811 = vmatpush1.bf16.msra.mxu0 %v347
      %812 = vmatprep.subr.bf16.mxu0 %v352
      %813 = vmatpush1.bf16.msra.mxu0 %v351
      %814 = vmatprep.subr.bf16.mxu0 %v356
      %815 = vmatpush1.bf16.msra.mxu0 %v355
      %816 = vmatprep.subr.bf16.mxu0 %v360
      %817 = vmatpush1.bf16.msra.mxu0 %v359
      %818 = vmatprep.subr.bf16.mxu0 %v364
      %819 = vmatpush1.bf16.msra.mxu0 %v363
      %820 = vmatprep.subr.bf16.mxu0 %v368
      %821 = vmatpush1.bf16.msra.mxu0 %v367
      %822 = vmatprep.subr.bf16.mxu0 %v372
      %823 = vmatpush1.bf16.msra.mxu0 %v371
      %824 = vmatprep.subr.bf16.mxu0 0
      %825 = vmatpush1.bf16.msra.mxu0 0
      %826 = vmatprep.subr.bf16.mxu0 0
      %827 = vmatpush1.bf16.msra.mxu0 0
      %828 = vmatprep.subr.bf16.mxu0 0
      %829 = vmatpush1.bf16.msra.mxu0 0
      %830 = vmatprep.subr.bf16.mxu0 0
      %831 = vmatpush1.bf16.msra.mxu0 0
      %832 = vmatprep.subr.bf16.mxu0 0
      %833 = vmatpush1.bf16.msra.mxu0 0
      %834 = vmatprep.subr.bf16.mxu0 0
      %835 = vmatpush1.bf16.msra.mxu0 0
      %836 = vmatprep.subr.bf16.mxu0 0
      %837 = vmatpush1.bf16.msra.mxu0 0
      %838 = vmatprep.subr.bf16.mxu0 0
      %839 = vmatpush1.bf16.msra.mxu0 0
      %840 = vmatprep.mubr.bf16.mxu0 0
      %841 = vmatmul.mubr.bf16.gmra.mrb[0].mxu0 %v761
      %v842 = vpop.f32.mrb[0].mxu0
      %v843 = vadd.f32 %v765, %v842
      %v844 = vpop.f32.mrb[0].mxu0
      %v845 = vadd.f32 %v766, %v844
      %v846 = vpop.f32.mrb[0].mxu0
      %v847 = vpop.f32.mrb[0].mxu0
      %848 = vdwg.mxu0
      %v849 = vxor.u32 %v802, 2147483648
      %v850 = vmul.f32 %v849, 1.442695
      %v851 = vpow.pop %v850
      %v852 = vadd.f32 %v851, 1.0
      %v853 = vrcp.pop %v852
      %v854 = vmul.f32 1.0, %v853
      %v855 = vxor.u32 %v804, 2147483648
      %v856 = vmul.f32 %v855, 1.442695
      %v857 = vpow.pop %v856
      %v858 = vadd.f32 %v857, 1.0
      %v859 = vrcp.pop %v858
      %v860 = vmul.f32 1.0, %v859
      %v861 = vtanh.pop %v843
      %v862 = vxor.u32 %v845, 2147483648
      %v863 = vmul.f32 %v862, 1.442695
      %v864 = vpow.pop %v863
      %v865 = vadd.f32 %v864, 1.0
      %v866 = vrcp.pop %v865
      %v867 = vmul.f32 1.0, %v866
      %v868 = vmul.f32 %v860, %v758
      %v869 = vmul.f32 %v854, %v861
      %v870 = vadd.f32 %v868, %v869
      %v871 = vtanh.pop %v870
      %v872 = vmul.f32 %v867, %v871
      %s873 = sadd.s32 %s511, 3
      %p874 = scmp.lt.s32.totalorder %s873, 10
      %s875 = scalar_select %p874, 1, 0
      %v876 = vstv %s875
      %vm877 = vcmp.eq.s32.totalorder %v876, 1
      %v878 = vsel %vm877, %v872, %v757
      %v879 = vsel %vm877, %v870, %v758
      %s880 = scalar_lea.vmem %s197, 24
      %881 = vst [vmem:[%s880] sm:$0xff] %v878
      %882 = vst [vmem:[#allocation2] sm:$0xff] %v878
      %883 = vst [vmem:[#allocation3] sm:$0xff] %v879
      %p884 = scmp.eq.s32.totalorder %s16, 2
      // Predicated region
      $region33: #{encoder_forward.5} parent=27 // pred_check
        %p885 = pneg %p884
      $region34: #{encoder_forward.5} parent=27 // pred_check_branch
        %887 = sbr.rel (%p885) target = $region36
      $region35: #{encoder_forward.5} parent=27 // pred_region
        %888 = vst [vmem:[%s3] sm:$0xff] %v878
        %889 = vst [vmem:[%s4] sm:$0xff] %v879
      $region36: #{encoder_forward.5} parent=27 // pred_fallthru
        _
      %s890 = smul.u32 4, %s16
      %p891 = scmp.lt.s32.totalorder %s890, 11
      %s892 = scalar_select %p891, %s890, 11
      %s893 = smul.addr %s892, 8
      %s894 = scalar_lea.vmem %s2, %s893
      // Predicated region
      $region37: #{encoder_forward.5} parent=27 // pred_check
        %p895 = pneg %p81
      $region38: #{encoder_forward.5} parent=27 // pred_check_branch
        %897 = sbr.rel (%p895) target = $region40
      $region39: #{encoder_forward.5} parent=27 // pred_region
        %s898 = smul.u32 4, %s16
      $region40: #{encoder_forward.5} parent=27 // pred_fallthru
        _
      // Predicated region
      $region41: #{encoder_forward.5} parent=27 // pred_check
        %p899 = pneg %p102
      $region42: #{encoder_forward.5} parent=27 // pred_check_branch
        %901 = sbr.rel (%p899) target = $region44
      $region43: #{encoder_forward.5} parent=27 // pred_region
        _
      $region44: #{encoder_forward.5} parent=27 // pred_fallthru
        _
      // Predicated region
      $region45: #{encoder_forward.5} parent=27 // pred_check
        %p902 = pneg %p123
      $region46: #{encoder_forward.5} parent=27 // pred_check_branch
        %904 = sbr.rel (%p902) target = $region48
      $region47: #{encoder_forward.5} parent=27 // pred_region
        _
      $region48: #{encoder_forward.5} parent=27 // pred_fallthru
        _
      // Predicated region
      $region49: #{encoder_forward.5} parent=27 // pred_check
        %p905 = pneg %p102
      $region50: #{encoder_forward.5} parent=27 // pred_check_branch
        %907 = sbr.rel (%p905) target = $region52
      $region51: #{encoder_forward.5} parent=27 // pred_region
        _
      $region52: #{encoder_forward.5} parent=27 // pred_fallthru
        _
      // Predicated region
      $region53: #{encoder_forward.5} parent=27 // pred_check
        %p908 = pneg %p123
      $region54: #{encoder_forward.5} parent=27 // pred_check_branch
        %910 = sbr.rel (%p908) target = $region56
      $region55: #{encoder_forward.5} parent=27 // pred_region
        _
      $region56: #{encoder_forward.5} parent=27 // pred_fallthru
        _
    $region28: #{encoder_forward.5} parent=5 // pred_fallthru
      _
    %p911 = scmp.le.s32.totalorder 2, %s11
    // Predicated region
    $region57: #{encoder_forward.5} parent=5 // pred_check
      %p912 = pneg %p911
    $region58: #{encoder_forward.5} parent=5 // pred_check_branch
      %914 = sbr.rel (%p912) target = $region60
    $region59: #{encoder_forward.5} parent=5 // pred_region
      %s915 = ssub.s32 %s11, 2
      // Predicated region
      $region61: #{encoder_forward.5} parent=59 // pred_check
        %p916 = pneg %p87
      $region62: #{encoder_forward.5} parent=59 // pred_check_branch
        %918 = sbr.rel (%p916) target = $region64
      $region63: #{encoder_forward.5} parent=59 // pred_region
        %s919 = smul.u32 4, %s17
        %p920 = scmp.lt.s32.totalorder %s919, 11
        %s921 = scalar_select %p920, %s919, 11
        %s922 = smul.addr %s921, 8
        %s923 = scalar_lea.vmem %s2, %s922
      $region64: #{encoder_forward.5} parent=59 // pred_fallthru
        _
    $region60: #{encoder_forward.5} parent=5 // pred_fallthru
      _
  $region6: #{encoder_forward.5} parent=0 // loop_footer
    %s15 = sadd.s32 1, %s11
  $region7: #{encoder_forward.5} parent=0 // loop_footer_branch
    %10 = sbr.rel target = $region3
  $region8: #{encoder_forward.5} parent=0 // loop_exit
    _

// kernel: encoder_forward.7
$region0: #{encoder_forward.7}
  #allocation0 [shape = 'u32[]', space=smem, size = 0x4, offset = 0x4, fixed_abs, tag = 'smem constant byte address 0x4 - core index']
  #allocation1 [shape = 'u32[144,128]{1,0:T(1,128)}', space=vmem, size = 0x12000, scoped, tag = 'internal scratch']
  #allocation2 [shape = 'f32[8,128]{1,0:T(8,128)}', space=vmem, size = 0x1000, scoped, tag = 'scratch operand']
  #allocation3 [shape = 'f32[8,128]{1,0:T(8,128)}', space=vmem, size = 0x1000, scoped, tag = 'scratch operand']
  %s0 = inlined_call_operand.vmem [shape: f32[12,8,512], index: 0, kind: input, shape index: {}]
  %s1 = inlined_call_operand.vmem [shape: bf16[128,512], index: 1, kind: input, shape index: {}]
  %s2 = inlined_call_operand.hbm [shape: f32[12,8,128], index: 2, kind: output, shape index: {0}]
  %s3 = inlined_call_operand.vmem [shape: f32[8,128], index: 3, kind: output, shape index: {1}]
  %s4 = inlined_call_operand.vmem [shape: f32[8,128], index: 4, kind: output, shape index: {2}]
  %5 = xla_tuple %s2, %s3, %s4
  %s6 = sld [smem:[#allocation0]]
  $region65: #{encoder_forward.7} parent=0
    _
  %s8 = ssub.s32 1, %s6
  %s9 = scalar_select 0, %s8, %s6
  $region1: #{encoder_forward.7} parent=0
    #allocation4 [shape = 'u8[32768]{0}', space=vmem, size = 0x8000, scoped, tag = 'output window, operand 0']
    #allocation5 [shape = 's32[2]{0}', space=sflag, size = 0x8, scoped, tag = 'scoped memory for encoder_forward.7']
    %10 = vsyncpa [#allocation5], 0
    %s11 = scalar_lea.sflag [#allocation5], 1
    %12 = vsyncpa %s11, 0
    loop: start=0, step=1, limit=5
    $region2: #{encoder_forward.7} parent=1 // loop_pre_header
      _
    $region3: #{encoder_forward.7} parent=1 // loop_header
      %s14 = sphi 0, %s18
      %p15 = scmp.ge.s32.totalorder %s14, 5
      %s24 = sphi 0, %s26
      %s27 = sphi 0, %s24
      %s28 = sphi 0, %s27
      %s44 = sphi 0, %s28
      %s48 = sphi 0, %s48
      %s50 = sphi 0, %s48
      %s51 = sphi 0, %s50
      %s65 = sphi 0, %s51
      %s71 = sphi 0, %s73
      %s74 = sphi 0, %s71
      %s75 = sphi 0, %s74
      %s91 = sphi 0, %s75
      %s95 = sphi 0, %s95
      %s97 = sphi 0, %s95
      %s98 = sphi 0, %s97
      %s112 = sphi 0, %s98
      %s116 = sphi 0, %s116
      %s118 = sphi 0, %s116
      %s119 = sphi 0, %s118
      %s133 = sphi 0, %s119
    $region4: #{encoder_forward.7} parent=1 // loop_header_branch
      %17 = sbr.rel (%p15) target = $region8
    $region5: #{encoder_forward.7} parent=1 // loop_body
      %s19 = ssub.s32 %s14, 1
      %s20 = ssub.s32 %s14, 2
      %s21 = sadd.s32 %s14, 1
      %s22 = ssub.s32 %s14, %s21
      %p23 = scmp.eq.s32.totalorder %s22, 0
      %s25 = sadd.s32 %s24, 1
      %s26 = scalar_select %p23, %s24, %s25
      %p29 = pneg %p23
      %p30 = scmp.eq.s32.totalorder %s14, 2
      %p31 = por %p29, %p30
      %p32 = scmp.ne.s32.totalorder %s24, %s27
      %p33 = scmp.eq.s32.totalorder %s14, 0
      %p34 = por %p32, %p33
      %p35 = scmp.ne.s32.totalorder %s24, %s27
      %p36 = scmp.eq.s32.totalorder %s19, 2
      %p37 = por %p35, %p36
      %p38 = scmp.ne.s32.totalorder %s27, %s28
      %p39 = scmp.eq.s32.totalorder %s19, 0
      %p40 = por %p38, %p39
      %p41 = scmp.ne.s32.totalorder %s27, %s28
      %p42 = scmp.eq.s32.totalorder %s20, 2
      %p43 = por %p41, %p42
      %p45 = scmp.ne.s32.totalorder %s28, %s44
      %p46 = scmp.eq.s32.totalorder %s20, 0
      %p47 = por %p45, %p46
      %s49 = sadd.s32 %s48, 1
      %p52 = scmp.eq.s32.totalorder %s14, 2
      %p53 = scmp.ne.s32.totalorder %s48, %s50
      %p54 = scmp.eq.s32.totalorder %s14, 0
      %p55 = por %p53, %p54
      %p56 = scmp.ne.s32.totalorder %s48, %s50
      %p57 = scmp.eq.s32.totalorder %s19, 2
      %p58 = por %p56, %p57
      %p59 = scmp.ne.s32.totalorder %s50, %s51
      %p60 = scmp.eq.s32.totalorder %s19, 0
      %p61 = por %p59, %p60
      %p62 = scmp.ne.s32.totalorder %s50, %s51
      %p63 = scmp.eq.s32.totalorder %s20, 2
      %p64 = por %p62, %p63
      %p66 = scmp.ne.s32.totalorder %s51, %s65
      %p67 = scmp.eq.s32.totalorder %s20, 0
      %p68 = por %p66, %p67
      %s69 = ssub.s32 %s14, %s21
      %p70 = scmp.eq.s32.totalorder %s69, 0
      %s72 = sadd.s32 %s71, 1
      %s73 = scalar_select %p70, %s71, %s72
      %p76 = pneg %p70
      %p77 = scmp.eq.s32.totalorder %s14, 2
      %p78 = por %p76, %p77
      %p79 = scmp.ne.s32.totalorder %s71, %s74
      %p80 = scmp.eq.s32.totalorder %s14, 0
      %p81 = por %p79, %p80
      %p82 = scmp.ne.s32.totalorder %s71, %s74
      %p83 = scmp.eq.s32.totalorder %s19, 2
      %p84 = por %p82, %p83
      %p85 = scmp.ne.s32.totalorder %s74, %s75
      %p86 = scmp.eq.s32.totalorder %s19, 0
      %p87 = por %p85, %p86
      %p88 = scmp.ne.s32.totalorder %s74, %s75
      %p89 = scmp.eq.s32.totalorder %s20, 2
      %p90 = por %p88, %p89
      %p92 = scmp.ne.s32.totalorder %s75, %s91
      %p93 = scmp.eq.s32.totalorder %s20, 0
      %p94 = por %p92, %p93
      %s96 = sadd.s32 %s95, 1
      %p99 = scmp.eq.s32.totalorder %s14, 2
      %p100 = scmp.ne.s32.totalorder %s95, %s97
      %p101 = scmp.eq.s32.totalorder %s14, 0
      %p102 = por %p100, %p101
      %p103 = scmp.ne.s32.totalorder %s95, %s97
      %p104 = scmp.eq.s32.totalorder %s19, 2
      %p105 = por %p103, %p104
      %p106 = scmp.ne.s32.totalorder %s97, %s98
      %p107 = scmp.eq.s32.totalorder %s19, 0
      %p108 = por %p106, %p107
      %p109 = scmp.ne.s32.totalorder %s97, %s98
      %p110 = scmp.eq.s32.totalorder %s20, 2
      %p111 = por %p109, %p110
      %p113 = scmp.ne.s32.totalorder %s98, %s112
      %p114 = scmp.eq.s32.totalorder %s20, 0
      %p115 = por %p113, %p114
      %s117 = sadd.s32 %s116, 1
      %p120 = scmp.eq.s32.totalorder %s14, 2
      %p121 = scmp.ne.s32.totalorder %s116, %s118
      %p122 = scmp.eq.s32.totalorder %s14, 0
      %p123 = por %p121, %p122
      %p124 = scmp.ne.s32.totalorder %s116, %s118
      %p125 = scmp.eq.s32.totalorder %s19, 2
      %p126 = por %p124, %p125
      %p127 = scmp.ne.s32.totalorder %s118, %s119
      %p128 = scmp.eq.s32.totalorder %s19, 0
      %p129 = por %p127, %p128
      %p130 = scmp.ne.s32.totalorder %s118, %s119
      %p131 = scmp.eq.s32.totalorder %s20, 2
      %p132 = por %p130, %p131
      %p134 = scmp.ne.s32.totalorder %s119, %s133
      %p135 = scmp.eq.s32.totalorder %s20, 0
      %p136 = por %p134, %p135
      %p137 = scmp.le.s32.totalorder 1, %s14
      %p138 = scmp.lt.s32.totalorder %s14, 4
      %p139 = pnand %p137, %p138
      %p140 = pneg %p139
      // Predicated region
      $region9: #{encoder_forward.7} parent=5 // pred_check
        _
      $region10: #{encoder_forward.7} parent=5 // pred_check_branch
        %142 = sbr.rel (%p139) target = $region12
      $region11: #{encoder_forward.7} parent=5 // pred_region
        %s143 = ssub.s32 %s14, 1
        // Predicated region
        $region13: #{encoder_forward.7} parent=11 // pred_check
          %p144 = pneg %p61
        $region14: #{encoder_forward.7} parent=11 // pred_check_branch
          %146 = sbr.rel (%p144) target = $region16
        $region15: #{encoder_forward.7} parent=11 // pred_region
          _
        $region16: #{encoder_forward.7} parent=11 // pred_fallthru
          _
      $region12: #{encoder_forward.7} parent=5 // pred_fallthru
        _
      %p147 = scmp.lt.s32.totalorder %s14, 3
      // Predicated region
      $region17: #{encoder_forward.7} parent=5 // pred_check
        %p148 = pneg %p147
      $region18: #{encoder_forward.7} parent=5 // pred_check_branch
        %150 = sbr.rel (%p148) target = $region20
      $region19: #{encoder_forward.7} parent=5 // pred_region
        // Predicated region
        $region21: #{encoder_forward.7} parent=19 // pred_check
          %p151 = pneg %p34
        $region22: #{encoder_forward.7} parent=19 // pred_check_branch
          %153 = sbr.rel (%p151) target = $region24
        $region23: #{encoder_forward.7} parent=19 // pred_region
          %s154 = smul.u32 4, %s14
          %p155 = scmp.lt.s32.totalorder %s154, 11
          %s156 = scalar_select %p155, %s154, 11
          %s157 = smul.addr %s156, 4
          %s158 = smul.addr %s157, 8
          %s159 = scalar_lea.vmem %s0, %s158
          %s160 = smul.u32 4, %s14
        $region24: #{encoder_forward.7} parent=19 // pred_fallthru
          _
      $region20: #{encoder_forward.7} parent=5 // pred_fallthru
        _
      %p161 = scmp.le.s32.totalorder 1, %s14
      %p162 = scmp.lt.s32.totalorder %s14, 4
      %p163 = pnand %p161, %p162
      %p164 = pneg %p163
      // Predicated region
      $region25: #{encoder_forward.7} parent=5 // pred_check
        _
      $region26: #{encoder_forward.7} parent=5 // pred_check_branch
        %166 = sbr.rel (%p163) target = $region28
      $region27: #{encoder_forward.7} parent=5 // pred_region
        %s167 = ssub.s32 %s14, 1
        %s168 = smul.u32 4, %s19
        %p169 = scmp.lt.s32.totalorder %s168, 11
        %s170 = scalar_select %p169, %s168, 11
        %s171 = smul.addr %s170, 4
        %s172 = smul.addr %s171, 8
        %s173 = scalar_lea.vmem %s0, %s172
        %p174 = pneg %p40
        %p175 = pneg %p37
        %p176 = pneg %p61
        %p177 = pneg %p58
        %p178 = pneg %p87
        %p179 = pneg %p84
        %s180 = sand.u32 %s74, 1
        %s181 = scalar_lea.sflag [#allocation5], %s180
        %s182 = sand.u32 %s74, 1
        %s183 = smul.addr %s182, 32
        %s184 = scalar_lea.vmem [#allocation4], %s183
        %p185 = pneg %p108
        %p186 = pneg %p105
        %p187 = pneg %p129
        %p188 = pneg %p126
        %s189 = smul.u32 4, %s19
        %p190 = scmp.lt.s32.totalorder %s189, 11
        %s191 = scalar_select %p190, %s189, 11
        %s192 = smul.addr %s191, 4
        %s193 = smul.addr %s192, 8
        %s194 = scalar_lea.vmem %s0, %s193
        %s195 = smul.u32 4, %s19
        %s196 = smul.u32 4, %s19
        %p198 = scmp.eq.s32.totalorder %s19, 0
        // Predicated region
        $region29: #{encoder_forward.7} parent=27 // pred_check
          %p199 = pneg %p198
        $region30: #{encoder_forward.7} parent=27 // pred_check_branch
          %201 = sbr.rel (%p199) target = $region32
        $region31: #{encoder_forward.7} parent=27 // pred_region
          %202 = vst [vmem:[#allocation2] sm:$0xff] 0.0
          %203 = vst [vmem:[#allocation3] sm:$0xff] 0.0
        $region32: #{encoder_forward.7} parent=27 // pred_fallthru
          _
        %v204 = vld [vmem:[%s1] sm:$0xff]
        %v205 = vld [vmem:[%s1 + $0x8] sm:$0xff]
        %v206 = vld [vmem:[%s1 + $0x10] sm:$0xff]
        %v207 = vld [vmem:[%s1 + $0x18] sm:$0xff]
        %v208 = vld [vmem:[%s1 + $0x20] sm:$0xff]
        %v209 = vld [vmem:[%s1 + $0x28] sm:$0xff]
        %v210 = vld [vmem:[%s1 + $0x30] sm:$0xff]
        %v211 = vld [vmem:[%s1 + $0x38] sm:$0xff]
        %v212 = vld [vmem:[%s1 + $0x40] sm:$0xff]
        %v213 = vld [vmem:[%s1 + $0x48] sm:$0xff]
        %v214 = vld [vmem:[%s1 + $0x50] sm:$0xff]
        %v215 = vld [vmem:[%s1 + $0x58] sm:$0xff]
        %v216 = vld [vmem:[%s1 + $0x60] sm:$0xff]
        %v217 = vld [vmem:[%s1 + $0x68] sm:$0xff]
        %v218 = vld [vmem:[%s1 + $0x70] sm:$0xff]
        %v219 = vld [vmem:[%s1 + $0x78] sm:$0xff]
        %v220 = vld [vmem:[%s1 + $0x80] sm:$0xff]
        %v221 = vld [vmem:[%s1 + $0x88] sm:$0xff]
        %v222 = vld [vmem:[%s1 + $0x90] sm:$0xff]
        %v223 = vld [vmem:[%s1 + $0x98] sm:$0xff]
        %v224 = vld [vmem:[%s1 + $0xa0] sm:$0xff]
        %v225 = vld [vmem:[%s1 + $0xa8] sm:$0xff]
        %v226 = vld [vmem:[%s1 + $0xb0] sm:$0xff]
        %v227 = vld [vmem:[%s1 + $0xb8] sm:$0xff]
        %v228 = vld [vmem:[%s1 + $0xc0] sm:$0xff]
        %v229 = vld [vmem:[%s1 + $0xc8] sm:$0xff]
        %v230 = vld [vmem:[%s1 + $0xd0] sm:$0xff]
        %v231 = vld [vmem:[%s1 + $0xd8] sm:$0xff]
        %v232 = vld [vmem:[%s1 + $0xe0] sm:$0xff]
        %v233 = vld [vmem:[%s1 + $0xe8] sm:$0xff]
        %v234 = vld [vmem:[%s1 + $0xf0] sm:$0xff]
        %v235 = vld [vmem:[%s1 + $0xf8] sm:$0xff]
        %v236 = vld [vmem:[#allocation2] sm:$0xff]
        %v237 = vld [vmem:[#allocation3] sm:$0xff]
        %v238 = vpack.c.bf16 %v236, %v236
        %v239 = vld [vmem:[%s194] sm:$0xff]
        %v240 = vld [vmem:[%s194 + $0x8] sm:$0xff]
        %v241 = vld [vmem:[%s194 + $0x10] sm:$0xff]
        %v242 = vld [vmem:[%s194 + $0x18] sm:$0xff]
        %v275 = vunpack.c.l.b16 %v204
        %v276 = vunpack.c.h.b16 %v204
        %v277 = vunpack.c.l.b16 %v205
        %v278 = vunpack.c.h.b16 %v205
        %v279 = vunpack.c.l.b16 %v206
        %v280 = vunpack.c.h.b16 %v206
        %v281 = vunpack.c.l.b16 %v207
        %v282 = vunpack.c.h.b16 %v207
        %v283 = vunpack.c.l.b16 %v208
        %v284 = vunpack.c.h.b16 %v208
        %v285 = vunpack.c.l.b16 %v209
        %v286 = vunpack.c.h.b16 %v209
        %v287 = vunpack.c.l.b16 %v210
        %v288 = vunpack.c.h.b16 %v210
        %v289 = vunpack.c.l.b16 %v211
        %v290 = vunpack.c.h.b16 %v211
        %v291 = vunpack.c.l.b16 %v212
        %v292 = vunpack.c.h.b16 %v212
        %v293 = vunpack.c.l.b16 %v213
        %v294 = vunpack.c.h.b16 %v213
        %v295 = vunpack.c.l.b16 %v214
        %v296 = vunpack.c.h.b16 %v214
        %v297 = vunpack.c.l.b16 %v215
        %v298 = vunpack.c.h.b16 %v215
        %v299 = vunpack.c.l.b16 %v216
        %v300 = vunpack.c.h.b16 %v216
        %v301 = vunpack.c.l.b16 %v217
        %v302 = vunpack.c.h.b16 %v217
        %v303 = vunpack.c.l.b16 %v218
        %v304 = vunpack.c.h.b16 %v218
        %v305 = vunpack.c.l.b16 %v219
        %v306 = vunpack.c.h.b16 %v219
        %v307 = vunpack.c.l.b16 %v220
        %v308 = vunpack.c.h.b16 %v220
        %v309 = vunpack.c.l.b16 %v221
        %v310 = vunpack.c.h.b16 %v221
        %v311 = vunpack.c.l.b16 %v222
        %v312 = vunpack.c.h.b16 %v222
        %v313 = vunpack.c.l.b16 %v223
        %v314 = vunpack.c.h.b16 %v223
        %v315 = vunpack.c.l.b16 %v224
        %v316 = vunpack.c.h.b16 %v224
        %v317 = vunpack.c.l.b16 %v225
        %v318 = vunpack.c.h.b16 %v225
        %v319 = vunpack.c.l.b16 %v226
        %v320 = vunpack.c.h.b16 %v226
        %v321 = vunpack.c.l.b16 %v227
        %v322 = vunpack.c.h.b16 %v227
        %v323 = vunpack.c.l.b16 %v228
        %v324 = vunpack.c.h.b16 %v228
        %v325 = vunpack.c.l.b16 %v229
        %v326 = vunpack.c.h.b16 %v229
        %v327 = vunpack.c.l.b16 %v230
        %v328 = vunpack.c.h.b16 %v230
        %v329 = vunpack.c.l.b16 %v231
        %v330 = vunpack.c.h.b16 %v231
        %v331 = vunpack.c.l.b16 %v232
        %v332 = vunpack.c.h.b16 %v232
        %v333 = vunpack.c.l.b16 %v233
        %v334 = vunpack.c.h.b16 %v233
        %v335 = vunpack.c.l.b16 %v234
        %v336 = vunpack.c.h.b16 %v234
        %v337 = vunpack.c.l.b16 %v235
        %v338 = vunpack.c.h.b16 %v235
        %v339 = vpack.c.b16 %v279, %v275
        %v340 = vpack.c.b16 %v280, %v276
        %v341 = vpack.c.b16 %v281, %v277
        %v342 = vpack.c.b16 %v282, %v278
        %v343 = vpack.c.b16 %v287, %v283
        %v344 = vpack.c.b16 %v288, %v284
        %v345 = vpack.c.b16 %v289, %v285
        %v346 = vpack.c.b16 %v290, %v286
        %v347 = vpack.c.b16 %v295, %v291
        %v348 = vpack.c.b16 %v296, %v292
        %v349 = vpack.c.b16 %v297, %v293
        %v350 = vpack.c.b16 %v298, %v294
        %v351 = vpack.c.b16 %v303, %v299
        %v352 = vpack.c.b16 %v304, %v300
        %v353 = vpack.c.b16 %v305, %v301
        %v354 = vpack.c.b16 %v306, %v302
        %v355 = vpack.c.b16 %v311, %v307
        %v356 = vpack.c.b16 %v312, %v308
        %v357 = vpack.c.b16 %v313, %v309
        %v358 = vpack.c.b16 %v314, %v310
        %v359 = vpack.c.b16 %v319, %v315
        %v360 = vpack.c.b16 %v320, %v316
        %v361 = vpack.c.b16 %v321, %v317
        %v362 = vpack.c.b16 %v322, %v318
        %v363 = vpack.c.b16 %v327, %v323
        %v364 = vpack.c.b16 %v328, %v324
        %v365 = vpack.c.b16 %v329, %v325
        %v366 = vpack.c.b16 %v330, %v326
        %v367 = vpack.c.b16 %v335, %v331
        %v368 = vpack.c.b16 %v336, %v332
        %v369 = vpack.c.b16 %v337, %v333
        %v370 = vpack.c.b16 %v338, %v334
        %403 = vmatprep.subr.bf16.mxu0 %v340
        %404 = vmatpush1.bf16.msra.mxu0 %v339
        %405 = vmatprep.subr.bf16.mxu0 %v344
        %406 = vmatpush1.bf16.msra.mxu0 %v343
        %407 = vmatprep.subr.bf16.mxu0 %v348
        %408 = vmatpush1.bf16.msra.mxu0 %v347
        %409 = vmatprep.subr.bf16.mxu0 %v352
        %410 = vmatpush1.bf16.msra.mxu0 %v351
        %411 = vmatprep.subr.bf16.mxu0 %v356
        %412 = vmatpush1.bf16.msra.mxu0 %v355
        %413 = vmatprep.subr.bf16.mxu0 %v360
        %414 = vmatpush1.bf16.msra.mxu0 %v359
        %415 = vmatprep.subr.bf16.mxu0 %v364
        %416 = vmatpush1.bf16.msra.mxu0 %v363
        %417 = vmatprep.subr.bf16.mxu0 %v368
        %418 = vmatpush1.bf16.msra.mxu0 %v367
        %419 = vmatprep.subr.bf16.mxu0 0
        %420 = vmatpush1.bf16.msra.mxu0 0
        %421 = vmatprep.subr.bf16.mxu0 0
        %422 = vmatpush1.bf16.msra.mxu0 0
        %423 = vmatprep.subr.bf16.mxu0 0
        %424 = vmatpush1.bf16.msra.mxu0 0
        %425 = vmatprep.subr.bf16.mxu0 0
        %426 = vmatpush1.bf16.msra.mxu0 0
        %427 = vmatprep.subr.bf16.mxu0 0
        %428 = vmatpush1.bf16.msra.mxu0 0
        %429 = vmatprep.subr.bf16.mxu0 0
        %430 = vmatpush1.bf16.msra.mxu0 0
        %431 = vmatprep.subr.bf16.mxu0 0
        %432 = vmatpush1.bf16.msra.mxu0 0
        %433 = vmatprep.subr.bf16.mxu0 0
        %434 = vmatpush1.bf16.msra.mxu0 0
        %435 = vmatprep.mubr.bf16.mxu0 0
        %436 = vmatmul.mubr.bf16.gmra.mrb[0].mxu0 %v238
        %v437 = vpop.f32.mrb[0].mxu0
        %v438 = vadd.f32 %v239, %v437
        %v439 = vpop.f32.mrb[0].mxu0
        %v440 = vadd.f32 %v240, %v439
        %v441 = vpop.f32.mrb[0].mxu0
        %v442 = vpop.f32.mrb[0].mxu0
        %443 = vdwg.mxu0
        %444 = vmatprep.subr.bf16.mxu0 %v342
        %445 = vmatpush1.bf16.msra.mxu0 %v341
        %446 = vmatprep.subr.bf16.mxu0 %v346
        %447 = vmatpush1.bf16.msra.mxu0 %v345
        %448 = vmatprep.subr.bf16.mxu0 %v350
        %449 = vmatpush1.bf16.msra.mxu0 %v349
        %450 = vmatprep.subr.bf16.mxu0 %v354
        %451 = vmatpush1.bf16.msra.mxu0 %v353
        %452 = vmatprep.subr.bf16.mxu0 %v358
        %453 = vmatpush1.bf16.msra.mxu0 %v357
        %454 = vmatprep.subr.bf16.mxu0 %v362
        %455 = vmatpush1.bf16.msra.mxu0 %v361
        %456 = vmatprep.subr.bf16.mxu0 %v366
        %457 = vmatpush1.bf16.msra.mxu0 %v365
        %458 = vmatprep.subr.bf16.mxu0 %v370
        %459 = vmatpush1.bf16.msra.mxu0 %v369
        %460 = vmatprep.subr.bf16.mxu0 0
        %461 = vmatpush1.bf16.msra.mxu0 0
        %462 = vmatprep.subr.bf16.mxu0 0
        %463 = vmatpush1.bf16.msra.mxu0 0
        %464 = vmatprep.subr.bf16.mxu0 0
        %465 = vmatpush1.bf16.msra.mxu0 0
        %466 = vmatprep.subr.bf16.mxu0 0
        %467 = vmatpush1.bf16.msra.mxu0 0
        %468 = vmatprep.subr.bf16.mxu0 0
        %469 = vmatpush1.bf16.msra.mxu0 0
        %470 = vmatprep.subr.bf16.mxu0 0
        %471 = vmatpush1.bf16.msra.mxu0 0
        %472 = vmatprep.subr.bf16.mxu0 0
        %473 = vmatpush1.bf16.msra.mxu0 0
        %474 = vmatprep.subr.bf16.mxu0 0
        %475 = vmatpush1.bf16.msra.mxu0 0
        %476 = vmatprep.mubr.bf16.mxu0 0
        %477 = vmatmul.mubr.bf16.gmra.mrb[0].mxu0 %v238
        %v478 = vpop.f32.mrb[0].mxu0
        %v479 = vadd.f32 %v241, %v478
        %v480 = vpop.f32.mrb[0].mxu0
        %v481 = vadd.f32 %v242, %v480
        %v482 = vpop.f32.mrb[0].mxu0
        %v483 = vpop.f32.mrb[0].mxu0
        %484 = vdwg.mxu0
        %v485 = vxor.u32 %v438, 2147483648
        %v486 = vmul.f32 %v485, 1.442695
        %v487 = vpow.pop %v486
        %v488 = vadd.f32 %v487, 1.0
        %v489 = vrcp.pop %v488
        %v490 = vmul.f32 1.0, %v489
        %v491 = vxor.u32 %v440, 2147483648
        %v492 = vmul.f32 %v491, 1.442695
        %v493 = vpow.pop %v492
        %v494 = vadd.f32 %v493, 1.0
        %v495 = vrcp.pop %v494
        %v496 = vmul.f32 1.0, %v495
        %v497 = vtanh.pop %v479
        %v498 = vxor.u32 %v481, 2147483648
        %v499 = vmul.f32 %v498, 1.442695
        %v500 = vpow.pop %v499
        %v501 = vadd.f32 %v500, 1.0
        %v502 = vrcp.pop %v501
        %v503 = vmul.f32 1.0, %v502
        %v504 = vmul.f32 %v496, %v237
        %v505 = vmul.f32 %v490, %v497
        %v506 = vadd.f32 %v504, %v505
        %v507 = vtanh.pop %v506
        %v508 = vmul.f32 %v503, %v507
        %s509 = smul.u32 %s19, 4
        %p510 = scmp.lt.s32.totalorder %s509, 10
        %s511 = scalar_select %p510, 1, 0
        %v512 = vstv %s511
        %vm513 = vcmp.eq.s32.totalorder %v512, 1
        %v514 = vsel %vm513, %v508, %v236
        %v515 = vsel %vm513, %v506, %v237
        %516 = vst [vmem:[%s184] sm:$0xff] %v514
        %v517 = vpack.c.bf16 %v514, %v514
        %s518 = scalar_lea.vmem %s194, 32
        %v519 = vld [vmem:[%s518] sm:$0xff]
        %v520 = vld [vmem:[%s518 + $0x8] sm:$0xff]
        %v521 = vld [vmem:[%s518 + $0x10] sm:$0xff]
        %v522 = vld [vmem:[%s518 + $0x18] sm:$0xff]
        %523 = vmatprep.subr.bf16.mxu0 %v340
        %524 = vmatpush1.bf16.msra.mxu0 %v339
        %525 = vmatprep.subr.bf16.mxu0 %v344
        %526 = vmatpush1.bf16.msra.mxu0 %v343
        %527 = vmatprep.subr.bf16.mxu0 %v348
        %528 = vmatpush1.bf16.msra.mxu0 %v347
        %529 = vmatprep.subr.bf16.mxu0 %v352
        %530 = vmatpush1.bf16.msra.mxu0 %v351
        %531 = vmatprep.subr.bf16.mxu0 %v356
        %532 = vmatpush1.bf16.msra.mxu0 %v355
        %533 = vmatprep.subr.bf16.mxu0 %v360
        %534 = vmatpush1.bf16.msra.mxu0 %v359
        %535 = vmatprep.subr.bf16.mxu0 %v364
        %536 = vmatpush1.bf16.msra.mxu0 %v363
        %537 = vmatprep.subr.bf16.mxu0 %v368
        %538 = vmatpush1.bf16.msra.mxu0 %v367
        %539 = vmatprep.subr.bf16.mxu0 0
        %540 = vmatpush1.bf16.msra.mxu0 0
        %541 = vmatprep.subr.bf16.mxu0 0
        %542 = vmatpush1.bf16.msra.mxu0 0
        %543 = vmatprep.subr.bf16.mxu0 0
        %544 = vmatpush1.bf16.msra.mxu0 0
        %545 = vmatprep.subr.bf16.mxu0 0
        %546 = vmatpush1.bf16.msra.mxu0 0
        %547 = vmatprep.subr.bf16.mxu0 0
        %548 = vmatpush1.bf16.msra.mxu0 0
        %549 = vmatprep.subr.bf16.mxu0 0
        %550 = vmatpush1.bf16.msra.mxu0 0
        %551 = vmatprep.subr.bf16.mxu0 0
        %552 = vmatpush1.bf16.msra.mxu0 0
        %553 = vmatprep.subr.bf16.mxu0 0
        %554 = vmatpush1.bf16.msra.mxu0 0
        %555 = vmatprep.mubr.bf16.mxu0 0
        %556 = vmatmul.mubr.bf16.gmra.mrb[0].mxu0 %v517
        %v557 = vpop.f32.mrb[0].mxu0
        %v558 = vadd.f32 %v519, %v557
        %v559 = vpop.f32.mrb[0].mxu0
        %v560 = vadd.f32 %v520, %v559
        %v561 = vpop.f32.mrb[0].mxu0
        %v562 = vpop.f32.mrb[0].mxu0
        %563 = vdwg.mxu0
        %564 = vmatprep.subr.bf16.mxu0 %v342
        %565 = vmatpush1.bf16.msra.mxu0 %v341
        %566 = vmatprep.subr.bf16.mxu0 %v346
        %567 = vmatpush1.bf16.msra.mxu0 %v345
        %568 = vmatprep.subr.bf16.mxu0 %v350
        %569 = vmatpush1.bf16.msra.mxu0 %v349
        %570 = vmatprep.subr.bf16.mxu0 %v354
        %571 = vmatpush1.bf16.msra.mxu0 %v353
        %572 = vmatprep.subr.bf16.mxu0 %v358
        %573 = vmatpush1.bf16.msra.mxu0 %v357
        %574 = vmatprep.subr.bf16.mxu0 %v362
        %575 = vmatpush1.bf16.msra.mxu0 %v361
        %576 = vmatprep.subr.bf16.mxu0 %v366
        %577 = vmatpush1.bf16.msra.mxu0 %v365
        %578 = vmatprep.subr.bf16.mxu0 %v370
        %579 = vmatpush1.bf16.msra.mxu0 %v369
        %580 = vmatprep.subr.bf16.mxu0 0
        %581 = vmatpush1.bf16.msra.mxu0 0
        %582 = vmatprep.subr.bf16.mxu0 0
        %583 = vmatpush1.bf16.msra.mxu0 0
        %584 = vmatprep.subr.bf16.mxu0 0
        %585 = vmatpush1.bf16.msra.mxu0 0
        %586 = vmatprep.subr.bf16.mxu0 0
        %587 = vmatpush1.bf16.msra.mxu0 0
        %588 = vmatprep.subr.bf16.mxu0 0
        %589 = vmatpush1.bf16.msra.mxu0 0
        %590 = vmatprep.subr.bf16.mxu0 0
        %591 = vmatpush1.bf16.msra.mxu0 0
        %592 = vmatprep.subr.bf16.mxu0 0
        %593 = vmatpush1.bf16.msra.mxu0 0
        %594 = vmatprep.subr.bf16.mxu0 0
        %595 = vmatpush1.bf16.msra.mxu0 0
        %596 = vmatprep.mubr.bf16.mxu0 0
        %597 = vmatmul.mubr.bf16.gmra.mrb[0].mxu0 %v517
        %v598 = vpop.f32.mrb[0].mxu0
        %v599 = vadd.f32 %v521, %v598
        %v600 = vpop.f32.mrb[0].mxu0
        %v601 = vadd.f32 %v522, %v600
        %v602 = vpop.f32.mrb[0].mxu0
        %v603 = vpop.f32.mrb[0].mxu0
        %604 = vdwg.mxu0
        %v605 = vxor.u32 %v558, 2147483648
        %v606 = vmul.f32 %v605, 1.442695
        %v607 = vpow.pop %v606
        %v608 = vadd.f32 %v607, 1.0
        %v609 = vrcp.pop %v608
        %v610 = vmul.f32 1.0, %v609
        %v611 = vxor.u32 %v560, 2147483648
        %v612 = vmul.f32 %v611, 1.442695
        %v613 = vpow.pop %v612
        %v614 = vadd.f32 %v613, 1.0
        %v615 = vrcp.pop %v614
        %v616 = vmul.f32 1.0, %v615
        %v617 = vtanh.pop %v599
        %v618 = vxor.u32 %v601, 2147483648
        %v619 = vmul.f32 %v618, 1.442695
        %v620 = vpow.pop %v619
        %v621 = vadd.f32 %v620, 1.0
        %v622 = vrcp.pop %v621
        %v623 = vmul.f32 1.0, %v622
        %v624 = vmul.f32 %v616, %v515
        %v625 = vmul.f32 %v610, %v617
        %v626 = vadd.f32 %v624, %v625
        %v627 = vtanh.pop %v626
        %v628 = vmul.f32 %v623, %v627
        %s629 = sadd.s32 %s509, 1
        %p630 = scmp.lt.s32.totalorder %s629, 10
        %s631 = scalar_select %p630, 1, 0
        %v632 = vstv %s631
        %vm633 = vcmp.eq.s32.totalorder %v632, 1
        %v634 = vsel %vm633, %v628, %v514
        %v635 = vsel %vm633, %v626, %v515
        %s636 = scalar_lea.vmem %s184, 8 [#allocation4]
        %637 = vst [vmem:[%s636] sm:$0xff] %v634
        %v638 = vpack.c.bf16 %v634, %v634
        %s639 = scalar_lea.vmem %s194, 64
        %v640 = vld [vmem:[%s639] sm:$0xff]
        %v641 = vld [vmem:[%s639 + $0x8] sm:$0xff]
        %v642 = vld [vmem:[%s639 + $0x10] sm:$0xff]
        %v643 = vld [vmem:[%s639 + $0x18] sm:$0xff]
        %644 = vmatprep.subr.bf16.mxu0 %v340
        %645 = vmatpush1.bf16.msra.mxu0 %v339
        %646 = vmatprep.subr.bf16.mxu0 %v344
        %647 = vmatpush1.bf16.msra.mxu0 %v343
        %648 = vmatprep.subr.bf16.mxu0 %v348
        %649 = vmatpush1.bf16.msra.mxu0 %v347
        %650 = vmatprep.subr.bf16.mxu0 %v352
        %651 = vmatpush1.bf16.msra.mxu0 %v351
        %652 = vmatprep.subr.bf16.mxu0 %v356
        %653 = vmatpush1.bf16.msra.mxu0 %v355
        %654 = vmatprep.subr.bf16.mxu0 %v360
        %655 = vmatpush1.bf16.msra.mxu0 %v359
        %656 = vmatprep.subr.bf16.mxu0 %v364
        %657 = vmatpush1.bf16.msra.mxu0 %v363
        %658 = vmatprep.subr.bf16.mxu0 %v368
        %659 = vmatpush1.bf16.msra.mxu0 %v367
        %660 = vmatprep.subr.bf16.mxu0 0
        %661 = vmatpush1.bf16.msra.mxu0 0
        %662 = vmatprep.subr.bf16.mxu0 0
        %663 = vmatpush1.bf16.msra.mxu0 0
        %664 = vmatprep.subr.bf16.mxu0 0
        %665 = vmatpush1.bf16.msra.mxu0 0
        %666 = vmatprep.subr.bf16.mxu0 0
        %667 = vmatpush1.bf16.msra.mxu0 0
        %668 = vmatprep.subr.bf16.mxu0 0
        %669 = vmatpush1.bf16.msra.mxu0 0
        %670 = vmatprep.subr.bf16.mxu0 0
        %671 = vmatpush1.bf16.msra.mxu0 0
        %672 = vmatprep.subr.bf16.mxu0 0
        %673 = vmatpush1.bf16.msra.mxu0 0
        %674 = vmatprep.subr.bf16.mxu0 0
        %675 = vmatpush1.bf16.msra.mxu0 0
        %676 = vmatprep.mubr.bf16.mxu0 0
        %677 = vmatmul.mubr.bf16.gmra.mrb[0].mxu0 %v638
        %v678 = vpop.f32.mrb[0].mxu0
        %v679 = vadd.f32 %v640, %v678
        %v680 = vpop.f32.mrb[0].mxu0
        %v681 = vadd.f32 %v641, %v680
        %v682 = vpop.f32.mrb[0].mxu0
        %v683 = vpop.f32.mrb[0].mxu0
        %684 = vdwg.mxu0
        %685 = vmatprep.subr.bf16.mxu0 %v342
        %686 = vmatpush1.bf16.msra.mxu0 %v341
        %687 = vmatprep.subr.bf16.mxu0 %v346
        %688 = vmatpush1.bf16.msra.mxu0 %v345
        %689 = vmatprep.subr.bf16.mxu0 %v350
        %690 = vmatpush1.bf16.msra.mxu0 %v349
        %691 = vmatprep.subr.bf16.mxu0 %v354
        %692 = vmatpush1.bf16.msra.mxu0 %v353
        %693 = vmatprep.subr.bf16.mxu0 %v358
        %694 = vmatpush1.bf16.msra.mxu0 %v357
        %695 = vmatprep.subr.bf16.mxu0 %v362
        %696 = vmatpush1.bf16.msra.mxu0 %v361
        %697 = vmatprep.subr.bf16.mxu0 %v366
        %698 = vmatpush1.bf16.msra.mxu0 %v365
        %699 = vmatprep.subr.bf16.mxu0 %v370
        %700 = vmatpush1.bf16.msra.mxu0 %v369
        %701 = vmatprep.subr.bf16.mxu0 0
        %702 = vmatpush1.bf16.msra.mxu0 0
        %703 = vmatprep.subr.bf16.mxu0 0
        %704 = vmatpush1.bf16.msra.mxu0 0
        %705 = vmatprep.subr.bf16.mxu0 0
        %706 = vmatpush1.bf16.msra.mxu0 0
        %707 = vmatprep.subr.bf16.mxu0 0
        %708 = vmatpush1.bf16.msra.mxu0 0
        %709 = vmatprep.subr.bf16.mxu0 0
        %710 = vmatpush1.bf16.msra.mxu0 0
        %711 = vmatprep.subr.bf16.mxu0 0
        %712 = vmatpush1.bf16.msra.mxu0 0
        %713 = vmatprep.subr.bf16.mxu0 0
        %714 = vmatpush1.bf16.msra.mxu0 0
        %715 = vmatprep.subr.bf16.mxu0 0
        %716 = vmatpush1.bf16.msra.mxu0 0
        %717 = vmatprep.mubr.bf16.mxu0 0
        %718 = vmatmul.mubr.bf16.gmra.mrb[0].mxu0 %v638
        %v719 = vpop.f32.mrb[0].mxu0
        %v720 = vadd.f32 %v642, %v719
        %v721 = vpop.f32.mrb[0].mxu0
        %v722 = vadd.f32 %v643, %v721
        %v723 = vpop.f32.mrb[0].mxu0
        %v724 = vpop.f32.mrb[0].mxu0
        %725 = vdwg.mxu0
        %v726 = vxor.u32 %v679, 2147483648
        %v727 = vmul.f32 %v726, 1.442695
        %v728 = vpow.pop %v727
        %v729 = vadd.f32 %v728, 1.0
        %v730 = vrcp.pop %v729
        %v731 = vmul.f32 1.0, %v730
        %v732 = vxor.u32 %v681, 2147483648
        %v733 = vmul.f32 %v732, 1.442695
        %v734 = vpow.pop %v733
        %v735 = vadd.f32 %v734, 1.0
        %v736 = vrcp.pop %v735
        %v737 = vmul.f32 1.0, %v736
        %v738 = vtanh.pop %v720
        %v739 = vxor.u32 %v722, 2147483648
        %v740 = vmul.f32 %v739, 1.442695
        %v741 = vpow.pop %v740
        %v742 = vadd.f32 %v741, 1.0
        %v743 = vrcp.pop %v742
        %v744 = vmul.f32 1.0, %v743
        %v745 = vmul.f32 %v737, %v635
        %v746 = vmul.f32 %v731, %v738
        %v747 = vadd.f32 %v745, %v746
        %v748 = vtanh.pop %v747
        %v749 = vmul.f32 %v744, %v748
        %s750 = sadd.s32 %s509, 2
        %p751 = scmp.lt.s32.totalorder %s750, 10
        %s752 = scalar_select %p751, 1, 0
        %v753 = vstv %s752
        %vm754 = vcmp.eq.s32.totalorder %v753, 1
        %v755 = vsel %vm754, %v749, %v634
        %v756 = vsel %vm754, %v747, %v635
        %s757 = scalar_lea.vmem %s184, 16 [#allocation4]
        %758 = vst [vmem:[%s757] sm:$0xff] %v755
        %v759 = vpack.c.bf16 %v755, %v755
        %s760 = scalar_lea.vmem %s194, 96
        %v761 = vld [vmem:[%s760] sm:$0xff]
        %v762 = vld [vmem:[%s760 + $0x8] sm:$0xff]
        %v763 = vld [vmem:[%s760 + $0x10] sm:$0xff]
        %v764 = vld [vmem:[%s760 + $0x18] sm:$0xff]
        %765 = vmatprep.subr.bf16.mxu0 %v340
        %766 = vmatpush1.bf16.msra.mxu0 %v339
        %767 = vmatprep.subr.bf16.mxu0 %v344
        %768 = vmatpush1.bf16.msra.mxu0 %v343
        %769 = vmatprep.subr.bf16.mxu0 %v348
        %770 = vmatpush1.bf16.msra.mxu0 %v347
        %771 = vmatprep.subr.bf16.mxu0 %v352
        %772 = vmatpush1.bf16.msra.mxu0 %v351
        %773 = vmatprep.subr.bf16.mxu0 %v356
        %774 = vmatpush1.bf16.msra.mxu0 %v355
        %775 = vmatprep.subr.bf16.mxu0 %v360
        %776 = vmatpush1.bf16.msra.mxu0 %v359
        %777 = vmatprep.subr.bf16.mxu0 %v364
        %778 = vmatpush1.bf16.msra.mxu0 %v363
        %779 = vmatprep.subr.bf16.mxu0 %v368
        %780 = vmatpush1.bf16.msra.mxu0 %v367
        %781 = vmatprep.subr.bf16.mxu0 0
        %782 = vmatpush1.bf16.msra.mxu0 0
        %783 = vmatprep.subr.bf16.mxu0 0
        %784 = vmatpush1.bf16.msra.mxu0 0
        %785 = vmatprep.subr.bf16.mxu0 0
        %786 = vmatpush1.bf16.msra.mxu0 0
        %787 = vmatprep.subr.bf16.mxu0 0
        %788 = vmatpush1.bf16.msra.mxu0 0
        %789 = vmatprep.subr.bf16.mxu0 0
        %790 = vmatpush1.bf16.msra.mxu0 0
        %791 = vmatprep.subr.bf16.mxu0 0
        %792 = vmatpush1.bf16.msra.mxu0 0
        %793 = vmatprep.subr.bf16.mxu0 0
        %794 = vmatpush1.bf16.msra.mxu0 0
        %795 = vmatprep.subr.bf16.mxu0 0
        %796 = vmatpush1.bf16.msra.mxu0 0
        %797 = vmatprep.mubr.bf16.mxu0 0
        %798 = vmatmul.mubr.bf16.gmra.mrb[0].mxu0 %v759
        %v799 = vpop.f32.mrb[0].mxu0
        %v800 = vadd.f32 %v761, %v799
        %v801 = vpop.f32.mrb[0].mxu0
        %v802 = vadd.f32 %v762, %v801
        %v803 = vpop.f32.mrb[0].mxu0
        %v804 = vpop.f32.mrb[0].mxu0
        %805 = vdwg.mxu0
        %806 = vmatprep.subr.bf16.mxu0 %v342
        %807 = vmatpush1.bf16.msra.mxu0 %v341
        %808 = vmatprep.subr.bf16.mxu0 %v346
        %809 = vmatpush1.bf16.msra.mxu0 %v345
        %810 = vmatprep.subr.bf16.mxu0 %v350
        %811 = vmatpush1.bf16.msra.mxu0 %v349
        %812 = vmatprep.subr.bf16.mxu0 %v354
        %813 = vmatpush1.bf16.msra.mxu0 %v353
        %814 = vmatprep.subr.bf16.mxu0 %v358
        %815 = vmatpush1.bf16.msra.mxu0 %v357
        %816 = vmatprep.subr.bf16.mxu0 %v362
        %817 = vmatpush1.bf16.msra.mxu0 %v361
        %818 = vmatprep.subr.bf16.mxu0 %v366
        %819 = vmatpush1.bf16.msra.mxu0 %v365
        %820 = vmatprep.subr.bf16.mxu0 %v370
        %821 = vmatpush1.bf16.msra.mxu0 %v369
        %822 = vmatprep.subr.bf16.mxu0 0
        %823 = vmatpush1.bf16.msra.mxu0 0
        %824 = vmatprep.subr.bf16.mxu0 0
        %825 = vmatpush1.bf16.msra.mxu0 0
        %826 = vmatprep.subr.bf16.mxu0 0
        %827 = vmatpush1.bf16.msra.mxu0 0
        %828 = vmatprep.subr.bf16.mxu0 0
        %829 = vmatpush1.bf16.msra.mxu0 0
        %830 = vmatprep.subr.bf16.mxu0 0
        %831 = vmatpush1.bf16.msra.mxu0 0
        %832 = vmatprep.subr.bf16.mxu0 0
        %833 = vmatpush1.bf16.msra.mxu0 0
        %834 = vmatprep.subr.bf16.mxu0 0
        %835 = vmatpush1.bf16.msra.mxu0 0
        %836 = vmatprep.subr.bf16.mxu0 0
        %837 = vmatpush1.bf16.msra.mxu0 0
        %838 = vmatprep.mubr.bf16.mxu0 0
        %839 = vmatmul.mubr.bf16.gmra.mrb[0].mxu0 %v759
        %v840 = vpop.f32.mrb[0].mxu0
        %v841 = vadd.f32 %v763, %v840
        %v842 = vpop.f32.mrb[0].mxu0
        %v843 = vadd.f32 %v764, %v842
        %v844 = vpop.f32.mrb[0].mxu0
        %v845 = vpop.f32.mrb[0].mxu0
        %846 = vdwg.mxu0
        %v847 = vxor.u32 %v800, 2147483648
        %v848 = vmul.f32 %v847, 1.442695
        %v849 = vpow.pop %v848
        %v850 = vadd.f32 %v849, 1.0
        %v851 = vrcp.pop %v850
        %v852 = vmul.f32 1.0, %v851
        %v853 = vxor.u32 %v802, 2147483648
        %v854 = vmul.f32 %v853, 1.442695
        %v855 = vpow.pop %v854
        %v856 = vadd.f32 %v855, 1.0
        %v857 = vrcp.pop %v856
        %v858 = vmul.f32 1.0, %v857
        %v859 = vtanh.pop %v841
        %v860 = vxor.u32 %v843, 2147483648
        %v861 = vmul.f32 %v860, 1.442695
        %v862 = vpow.pop %v861
        %v863 = vadd.f32 %v862, 1.0
        %v864 = vrcp.pop %v863
        %v865 = vmul.f32 1.0, %v864
        %v866 = vmul.f32 %v858, %v756
        %v867 = vmul.f32 %v852, %v859
        %v868 = vadd.f32 %v866, %v867
        %v869 = vtanh.pop %v868
        %v870 = vmul.f32 %v865, %v869
        %s871 = sadd.s32 %s509, 3
        %p872 = scmp.lt.s32.totalorder %s871, 10
        %s873 = scalar_select %p872, 1, 0
        %v874 = vstv %s873
        %vm875 = vcmp.eq.s32.totalorder %v874, 1
        %v876 = vsel %vm875, %v870, %v755
        %v877 = vsel %vm875, %v868, %v756
        %s878 = scalar_lea.vmem %s184, 24 [#allocation4]
        %879 = vst [vmem:[%s878] sm:$0xff] %v876
        %880 = vst [vmem:[#allocation2] sm:$0xff] %v876
        %881 = vst [vmem:[#allocation3] sm:$0xff] %v877
        %p882 = scmp.eq.s32.totalorder %s19, 2
        // Predicated region
        $region33: #{encoder_forward.7} parent=27 // pred_check
          %p883 = pneg %p882
        $region34: #{encoder_forward.7} parent=27 // pred_check_branch
          %885 = sbr.rel (%p883) target = $region36
        $region35: #{encoder_forward.7} parent=27 // pred_region
          %886 = vst [vmem:[%s3] sm:$0xff] %v876
          %887 = vst [vmem:[%s4] sm:$0xff] %v877
        $region36: #{encoder_forward.7} parent=27 // pred_fallthru
          _
        %s888 = sand.u32 %s74, 1
        %s889 = scalar_lea.sflag [#allocation5], %s888
        %s890 = sand.u32 %s74, 1
        %s891 = smul.addr %s890, 32
        %s892 = scalar_lea.vmem [#allocation4], %s891
        // Predicated region
        $region37: #{encoder_forward.7} parent=27 // pred_check
          %p893 = pneg %p84
        $region38: #{encoder_forward.7} parent=27 // pred_check_branch
          %895 = sbr.rel (%p893) target = $region40
        $region39: #{encoder_forward.7} parent=27 // pred_region
          %s896 = smul.u32 4, %s19
          %s898 = ssub.s32 512, 512
          %899 = vsyncadd %s889, %s898
          %s900 = smul.addr %s896, 128
          %s901 = scalar_lea.hbm %s2, %s900
          %s902 = sshll.u32 %s892, 4
          %s903 = int_to_ptr.vmem [resolvable:$true] %s902
          %908 = dma.vmem_to_hbm [thread:$0]  %s903, 512, %s901, %s889, 128, 128, 8
        $region40: #{encoder_forward.7} parent=27 // pred_fallthru
          _
        // Predicated region
        $region41: #{encoder_forward.7} parent=27 // pred_check
          %p909 = pneg %p105
        $region42: #{encoder_forward.7} parent=27 // pred_check_branch
          %911 = sbr.rel (%p909) target = $region44
        $region43: #{encoder_forward.7} parent=27 // pred_region
          _
        $region44: #{encoder_forward.7} parent=27 // pred_fallthru
          _
        // Predicated region
        $region45: #{encoder_forward.7} parent=27 // pred_check
          %p912 = pneg %p126
        $region46: #{encoder_forward.7} parent=27 // pred_check_branch
          %914 = sbr.rel (%p912) target = $region48
        $region47: #{encoder_forward.7} parent=27 // pred_region
          _
        $region48: #{encoder_forward.7} parent=27 // pred_fallthru
          _
        // Predicated region
        $region49: #{encoder_forward.7} parent=27 // pred_check
          %p915 = pneg %p105
        $region50: #{encoder_forward.7} parent=27 // pred_check_branch
          %917 = sbr.rel (%p915) target = $region52
        $region51: #{encoder_forward.7} parent=27 // pred_region
          _
        $region52: #{encoder_forward.7} parent=27 // pred_fallthru
          _
        // Predicated region
        $region53: #{encoder_forward.7} parent=27 // pred_check
          %p918 = pneg %p126
        $region54: #{encoder_forward.7} parent=27 // pred_check_branch
          %920 = sbr.rel (%p918) target = $region56
        $region55: #{encoder_forward.7} parent=27 // pred_region
          _
        $region56: #{encoder_forward.7} parent=27 // pred_fallthru
          _
      $region28: #{encoder_forward.7} parent=5 // pred_fallthru
        _
      %p921 = scmp.le.s32.totalorder 2, %s14
      // Predicated region
      $region57: #{encoder_forward.7} parent=5 // pred_check
        %p922 = pneg %p921
      $region58: #{encoder_forward.7} parent=5 // pred_check_branch
        %924 = sbr.rel (%p922) target = $region60
      $region59: #{encoder_forward.7} parent=5 // pred_region
        %s925 = ssub.s32 %s14, 2
        // Predicated region
        $region61: #{encoder_forward.7} parent=59 // pred_check
          %p926 = pneg %p90
        $region62: #{encoder_forward.7} parent=59 // pred_check_branch
          %928 = sbr.rel (%p926) target = $region64
        $region63: #{encoder_forward.7} parent=59 // pred_region
          %s929 = sand.u32 %s75, 1
          %s930 = scalar_lea.sflag [#allocation5], %s929
          %s931 = sand.u32 %s75, 1
          %s932 = smul.addr %s931, 32
          %s933 = scalar_lea.vmem [#allocation4], %s932
          %934 = dma.done %s930, 512
        $region64: #{encoder_forward.7} parent=59 // pred_fallthru
          _
      $region60: #{encoder_forward.7} parent=5 // pred_fallthru
        _
    $region6: #{encoder_forward.7} parent=1 // loop_footer
      %s18 = sadd.s32 1, %s14
    $region7: #{encoder_forward.7} parent=1 // loop_footer_branch
      %13 = sbr.rel target = $region3
    $region8: #{encoder_forward.7} parent=1 // loop_exit
      _
    %935 = vsyncpa [#allocation5], 1
    %s936 = scalar_lea.sflag [#allocation5], 1
    %937 = vsyncpa %s936, 1

</llo_original>
